<compile_context>
chip_gen: v7x
topology: tpu7x:2x2x1
jax: 0.10.0
libtpu: 0.0.40
codegen_flags: <defaults>
</compile_context>

<pallas_src>
import functools

import jax
import jax.numpy as jnp
from jax import lax
from jax.experimental import pallas as pl
from jax.experimental.pallas import tpu as pltpu


def gru_chunk_kernel(x_ref, wih_ref, whh_ref, bih_ref, bhhn_ref,
                     wlin_ref, blin_ref, out_ref,
                     h_scratch, gi_scratch, hist_scratch,
                     *, tc, bblk, hp, skip, use_bf16):
    """One grid step = one batch block x one chunk of `tc` timesteps."""
    mxu = jnp.bfloat16 if use_bf16 else jnp.float32

    # Chunk 0 of each batch block: initial hidden is None in torch -> zeros.
    @pl.when(pl.program_id(1) == 0)
    def _():
        h_scratch[...] = jnp.zeros_like(h_scratch)

    # Hoisted input projection for the whole chunk (bias already holds
    # b_ih + [b_hh_r, b_hh_z, 0], folded in the wrapper).  x_ref is read
    # inline so the (rows, I) value is not live across the recurrence.
    gi_scratch[...] = (
        jnp.dot(x_ref[...].astype(mxu), wih_ref[...].astype(mxu),
                preferred_element_type=jnp.float32)
        + bih_ref[...])                                    # (tc*bblk, 3*hp) f32

    # Hoist recurrent weight and the n-gate hidden bias (broadcast ONCE).
    whh = whh_ref[...].astype(mxu)                         # (hp, 3*hp)
    bhh_n = jnp.broadcast_to(bhhn_ref[...], (bblk, hp))    # (bblk, hp)

    def step(t, h):
        row = pl.multiple_of(t * bblk, bblk)               # sublane-aligned
        gi_t = gi_scratch[pl.ds(row, bblk), :]             # (bblk, 3*hp)
        gh = jnp.dot(h.astype(mxu), whh,
                     preferred_element_type=jnp.float32)   # (bblk, 3*hp) f32
        # PyTorch GRU equations, gate order (r, z, n); lane-aligned slices.
        r = jax.nn.sigmoid(gi_t[:, 0:hp] + gh[:, 0:hp])
        z = jax.nn.sigmoid(gi_t[:, hp:2 * hp] + gh[:, hp:2 * hp])
        n = jnp.tanh(gi_t[:, 2 * hp:3 * hp] + r * (gh[:, 2 * hp:3 * hp] + bhh_n))
        h_new = (1.0 - z) * n + z * h                      # (bblk, hp) f32
        hist_scratch[pl.ds(row, bblk), :] = h_new
        return h_new

    h_final = lax.fori_loop(0, tc, step, h_scratch[...],
                            unroll=True if tc <= 16 else 8)
    h_scratch[...] = h_final                               # carry across chunks

    # Chunk epilogue: output Linear (+bias) + skip add, one lane-dense store.
    y = (jnp.dot(hist_scratch[...].astype(mxu), wlin_ref[...].astype(mxu),
                 preferred_element_type=jnp.float32)
         + blin_ref[...])                                  # (tc*bblk, Op)
    if skip > 0:
        y = y + x_ref[:, 0:skip]                           # re-read ref (skip==1)
    out_ref[...] = y.astype(out_ref.dtype)


def _pad_gate_cols(w, h, hp):
    """Pad each of the 3 gate groups along the last axis from h -> hp columns."""
    if hp == h:
        return w
    parts = jnp.split(w, 3, axis=-1)
    pad_width = [(0, 0)] * (w.ndim - 1) + [(0, hp - h)]
    return jnp.concatenate([jnp.pad(p, pad_width) for p in parts], axis=-1)


def _next_pow2(n):
    return 1 if n <= 1 else 1 << (n - 1).bit_length()


def basic_rnn_block_forward(x, wih_t, whh_t, bih, bhh, wlin_t, blin,
                            *, hidden_size, skip=1, use_bf16_matmul=False,
                            t_chunk=None):
    """x: (T, B, I) float32. Returns (T, B, O). Single-layer GRU + Linear + skip."""
    T, B, I = x.shape
    H = hidden_size
    O = wlin_t.shape[1]
    assert skip in (0, 1), "TODO(synk): skip>1 not implemented"

    LANE, SUB = 128, 8
    Hp = -(-H // LANE) * LANE                   # lane-aligned gate width
    Op = -(-O // LANE) * LANE                   # lane-dense output width

    # Batch blocking: one 8-sublane block at B<=8, else two blocks so v7x's
    # second TensorCore can take the parallel grid axis.
    if B <= SUB:
        Bp, NB = SUB, 1
    else:
        Bp = -(-B // (2 * SUB)) * (2 * SUB)
        NB = 2
    BBLK = Bp // NB                             # multiple of 8

    # --- chunk size from a VMEM budget; set vmem_limit_bytes explicitly ---
    f32b = 4
    per_t = f32b * BBLK * (3 * Hp + Hp + 2 * I + 2 * Op)   # gi + hist + 2x in/out
    fixed = f32b * (2 * (I * 3 * Hp + Hp * 3 * Hp + 3 * Hp + Hp + Hp * Op + Op)
                    + BBLK * Hp)                            # weights (x2) + h carry
    budget = 40 << 20                                       # safe on v7x (64 MiB)
    if t_chunk is None:
        tc_budget = max(1, (budget - fixed) // per_t)
        cap = min(1024, tc_budget, _next_pow2(T))
        tc = 1
        while tc * 2 <= cap:
            tc *= 2
    else:
        tc = t_chunk
    T_pad = -(-T // tc) * tc                    # pad ragged T instead of tc=1
    num_chunks = T_pad // tc
    vmem_limit = int(min(48 << 20, max(16 << 20, (fixed + per_t * tc) * 5 // 4)))

    # --- pad parameters once (zero padding is mathematically inert) ---
    # Fold b_hh's r/z parts into b_ih (associativity only; n-gate b_hh stays
    # inside the r*(...) term per the PyTorch GRU equations).
    bih_folded = bih + jnp.concatenate(
        [bhh[:, 0:2 * H], jnp.zeros_like(bhh[:, 2 * H:3 * H])], axis=-1)
    wih_p = _pad_gate_cols(wih_t, H, Hp)                                  # (I, 3Hp)
    whh_p = _pad_gate_cols(jnp.pad(whh_t, ((0, Hp - H), (0, 0))), H, Hp)  # (Hp, 3Hp)
    bih_p = _pad_gate_cols(bih_folded, H, Hp)                             # (1, 3Hp)
    bhhn_p = jnp.pad(bhh[:, 2 * H:3 * H], ((0, 0), (0, Hp - H)))          # (1, Hp)
    wlin_p = jnp.pad(wlin_t, ((0, Hp - H), (0, Op - O)))                  # (Hp, Op)
    blin_p = jnp.pad(blin, ((0, 0), (0, Op - O)))                         # (1, Op)

    # --- pad T/batch and rearrange to (batch_block, time, sub_batch) slabs ---
    x_pad = jnp.pad(x, ((0, T_pad - T), (0, Bp - B), (0, 0)))             # (Tp,Bp,I)
    x2d = (x_pad.reshape(T_pad, NB, BBLK, I)
           .transpose(1, 0, 2, 3)
           .reshape(NB * T_pad * BBLK, I))

    kernel = functools.partial(gru_chunk_kernel, tc=tc, bblk=BBLK, hp=Hp,
                               skip=skip, use_bf16=use_bf16_matmul)
    rows = tc * BBLK

    out2d = pl.pallas_call(
        kernel,
        out_shape=jax.ShapeDtypeStruct((NB * T_pad * BBLK, Op), x.dtype),
        grid_spec=pltpu.PrefetchScalarGridSpec(
            num_scalar_prefetch=0,
            grid=(NB, num_chunks),
            in_specs=[
                pl.BlockSpec((rows, I), lambda b, c: (b * num_chunks + c, 0)),  # x
                pl.BlockSpec((I, 3 * Hp), lambda b, c: (0, 0)),                 # W_ih^T
                pl.BlockSpec((Hp, 3 * Hp), lambda b, c: (0, 0)),                # W_hh^T
                pl.BlockSpec((1, 3 * Hp), lambda b, c: (0, 0)),                 # b_ih (folded)
                pl.BlockSpec((1, Hp), lambda b, c: (0, 0)),                     # b_hh (n gate)
                pl.BlockSpec((Hp, Op), lambda b, c: (0, 0)),                    # W_lin^T
                pl.BlockSpec((1, Op), lambda b, c: (0, 0)),                     # b_lin
            ],
            out_specs=pl.BlockSpec((rows, Op), lambda b, c: (b * num_chunks + c, 0)),
            scratch_shapes=[
                pltpu.VMEM((BBLK, Hp), jnp.float32),       # hidden carry
                pltpu.VMEM((rows, 3 * Hp), jnp.float32),   # hoisted gi
                pltpu.VMEM((rows, Hp), jnp.float32),       # h history
            ],
        ),
        compiler_params=pltpu.CompilerParams(
            dimension_semantics=("parallel", "arbitrary"),
            vmem_limit_bytes=vmem_limit),
    )(x2d, wih_p, whh_p, bih_p, bhhn_p, wlin_p, blin_p)

    out = (out2d.reshape(NB, T_pad, BBLK, Op)
           .transpose(1, 0, 2, 3)
           .reshape(T_pad, Bp, Op))
    return out[:T, :B, :O]


def reference_forward(x, wih_t, whh_t, bih, bhh, wlin_t, blin,
                      *, hidden_size, skip=1):
    """Pure-JAX reference mirroring torch nn.GRU + nn.Linear + skip."""
    H = hidden_size
    _, B, _ = x.shape

    def step(h, x_t):
        gi = x_t @ wih_t + bih
        gh = h @ whh_t + bhh
        r = jax.nn.sigmoid(gi[:, :H] + gh[:, :H])
        z = jax.nn.sigmoid(gi[:, H:2 * H] + gh[:, H:2 * H])
        n = jnp.tanh(gi[:, 2 * H:] + r * gh[:, 2 * H:])
        h_new = (1.0 - z) * n + z * h
        return h_new, h_new

    h0 = jnp.zeros((B, H), jnp.float32)
    _, hs = jax.lax.scan(step, h0, x)          # (T, B, H)
    y = hs @ wlin_t + blin                     # (T, B, O)
    if skip > 0:
        y = y + x[:, :, 0:skip]
    return y


if __name__ == "__main__":
    # params: {'block_type': 'GRU', 'input_size': 4, 'hidden_size': 32,
    #          'output_size': 4, 'num_layers': 1, 'skip': 1}  (lin_bias default False)
    T, B, I, H, O, SKIP = 8, 2, 4, 32, 4, 1
    LIN_BIAS = False  # module default

    key = jax.random.PRNGKey(0)
    kx, k1, k2, k3, k4, k5, k6 = jax.random.split(key, 7)
    stdv = 1.0 / jnp.sqrt(H)

    x = jax.random.normal(kx, (T, B, I), jnp.float32)

    # torch stores weight_ih_l0: (3H, I), weight_hh_l0: (3H, H); keep transposed copies.
    wih_t = jax.random.uniform(k1, (I, 3 * H), jnp.float32, -stdv, stdv)
    whh_t = jax.random.uniform(k2, (H, 3 * H), jnp.float32, -stdv, stdv)
    bih = jax.random.uniform(k3, (1, 3 * H), jnp.float32, -stdv, stdv)
    bhh = jax.random.uniform(k4, (1, 3 * H), jnp.float32, -stdv, stdv)
    wlin_t = jax.random.uniform(k5, (H, O), jnp.float32, -stdv, stdv)
    blin = (jax.random.uniform(k6, (1, O), jnp.float32, -stdv, stdv)
            if LIN_BIAS else jnp.zeros((1, O), jnp.float32))

    ref = reference_forward(x, wih_t, whh_t, bih, bhh, wlin_t, blin,
                            hidden_size=H, skip=SKIP)

    # f32 MXU path: bit-level agreement with the reference at 1e-5.
    out = basic_rnn_block_forward(x, wih_t, whh_t, bih, bhh, wlin_t, blin,
                                  hidden_size=H, skip=SKIP,
                                  use_bf16_matmul=False)
    out = jax.block_until_ready(out)
    assert out.shape == (T, B, O)
    assert jnp.allclose(out, ref, atol=1e-5, rtol=1e-5), "f32 mismatch vs reference"

    # bf16 MXU-operand path (perf mode): looser tolerance by construction.
    out_bf16 = basic_rnn_block_forward(x, wih_t, whh_t, bih, bhh, wlin_t, blin,
                                       hidden_size=H, skip=SKIP,
                                       use_bf16_matmul=True)
    out_bf16 = jax.block_until_ready(out_bf16)
    assert out_bf16.shape == (T, B, O)
    assert float(jnp.max(jnp.abs(out_bf16 - ref))) < 1e-1, "bf16 path diverged"

    print("KERNEL_OK")
</pallas_src>

<mosaic_0001>
module attributes {stable_mosaic.version = 11 : i64} {
  func.func @gru_chunk_kernel(%arg0: i32, %arg1: i32, %arg2: memref<64x4xf32, #tpu.memory_space<vmem>>, %arg3: memref<4x384xf32, #tpu.memory_space<vmem>>, %arg4: memref<128x384xf32, #tpu.memory_space<vmem>>, %arg5: memref<1x384xf32, #tpu.memory_space<vmem>>, %arg6: memref<1x128xf32, #tpu.memory_space<vmem>>, %arg7: memref<128x128xf32, #tpu.memory_space<vmem>>, %arg8: memref<1x128xf32, #tpu.memory_space<vmem>>, %arg9: memref<64x128xf32, #tpu.memory_space<vmem>>, %arg10: memref<8x128xf32, #tpu.memory_space<vmem>>, %arg11: memref<64x384xf32, #tpu.memory_space<vmem>>, %arg12: memref<64x128xf32, #tpu.memory_space<vmem>>) attributes {dimension_semantics = [#tpu.dimension_semantics<parallel>, #tpu.dimension_semantics<arbitrary>], iteration_bounds = array<i64: 1, 1>, scalar_prefetch = 0 : i64, scratch_operands = 3 : i64, tpu.core_type = #tpu.core_type<tc>, window_params = [{transform_indices = @transform_0, window_bounds = array<i64: 64, 4>}, {pipeline_mode = #tpu.pipeline_mode<synchronous>, transform_indices = @transform_1, window_bounds = array<i64: 4, 384>}, {pipeline_mode = #tpu.pipeline_mode<synchronous>, transform_indices = @transform_2, window_bounds = array<i64: 128, 384>}, {pipeline_mode = #tpu.pipeline_mode<synchronous>, transform_indices = @transform_3, window_bounds = array<i64: 1, 384>}, {pipeline_mode = #tpu.pipeline_mode<synchronous>, transform_indices = @transform_4, window_bounds = array<i64: 1, 128>}, {pipeline_mode = #tpu.pipeline_mode<synchronous>, transform_indices = @transform_5, window_bounds = array<i64: 128, 128>}, {pipeline_mode = #tpu.pipeline_mode<synchronous>, transform_indices = @transform_6, window_bounds = array<i64: 1, 128>}, {transform_indices = @transform_7, window_bounds = array<i64: 64, 128>}]} {
    %c0_i32 = arith.constant 0 : i32
    %0 = arith.cmpi eq, %arg1, %c0_i32 : i32
    %1 = arith.extui %0 : i1 to i32
    %c0_i32_0 = arith.constant 0 : i32
    %2 = arith.cmpi ne, %1, %c0_i32_0 : i32
    scf.if %2 {
      %cst_84 = arith.constant 0.000000e+00 : f32
      %298 = vector.broadcast %cst_84 : f32 to vector<8x128xf32>
      %c0_85 = arith.constant 0 : index
      %c0_86 = arith.constant 0 : index
      %299 = vector.load %arg10[%c0_85, %c0_86] : memref<8x128xf32, #tpu.memory_space<vmem>>, vector<8x128xf32>
      tpu.vector_store %arg10[%c0_85, %c0_86], %298 {strides = array<i32>} : memref<8x128xf32, #tpu.memory_space<vmem>>, vector<8x128xf32>,
    } else {
    }
    %c0 = arith.constant 0 : index
    %c0_1 = arith.constant 0 : index
    %3 = vector.load %arg2[%c0, %c0_1] : memref<64x4xf32, #tpu.memory_space<vmem>>, vector<64x4xf32>
    %c0_2 = arith.constant 0 : index
    %c0_3 = arith.constant 0 : index
    %4 = vector.load %arg3[%c0_2, %c0_3] : memref<4x384xf32, #tpu.memory_space<vmem>>, vector<4x384xf32>
    %cst = arith.constant dense<0.000000e+00> : vector<64x384xf32>
    %5 = tpu.matmul %3, %4, %cst {dimension_numbers = #tpu.dot_dimension_numbers<[1], [0], [0], [1], [0, 0, 1, 1], [], []>} : vector<64x4xf32>, vector<4x384xf32>, vector<64x384xf32> -> vector<64x384xf32>
    %c0_4 = arith.constant 0 : index
    %c0_5 = arith.constant 0 : index
    %6 = vector.load %arg5[%c0_4, %c0_5] : memref<1x384xf32, #tpu.memory_space<vmem>>, vector<1x384xf32>
    %7 = vector.broadcast %6 : vector<1x384xf32> to vector<64x384xf32>
    %8 = arith.addf %5, %7 : vector<64x384xf32>
    %c0_6 = arith.constant 0 : index
    %c0_7 = arith.constant 0 : index
    %9 = vector.load %arg11[%c0_6, %c0_7] : memref<64x384xf32, #tpu.memory_space<vmem>>, vector<64x384xf32>
    tpu.vector_store %arg11[%c0_6, %c0_7], %8 {strides = array<i32>} : memref<64x384xf32, #tpu.memory_space<vmem>>, vector<64x384xf32>,
    %c0_8 = arith.constant 0 : index
    %c0_9 = arith.constant 0 : index
    %10 = vector.load %arg4[%c0_8, %c0_9] : memref<128x384xf32, #tpu.memory_space<vmem>>, vector<128x384xf32>
    %c0_10 = arith.constant 0 : index
    %c0_11 = arith.constant 0 : index
    %11 = vector.load %arg6[%c0_10, %c0_11] : memref<1x128xf32, #tpu.memory_space<vmem>>, vector<1x128xf32>
    %12 = vector.shape_cast %11 : vector<1x128xf32> to vector<1x128xf32>
    %13 = vector.broadcast %12 : vector<1x128xf32> to vector<8x128xf32>
    %c0_12 = arith.constant 0 : index
    %c0_13 = arith.constant 0 : index
    %14 = vector.load %arg10[%c0_12, %c0_13] : memref<8x128xf32, #tpu.memory_space<vmem>>, vector<8x128xf32>
    %c0_i32_14 = arith.constant 0 : i32
    %c8_i32 = arith.constant 8 : i32
    %15 = arith.muli %c0_i32_14, %c8_i32 : i32
    %16 = tpu.assume_multiple %15, 8 : i32
    %17 = arith.index_cast %16 : i32 to index
    %c0_15 = arith.constant 0 : index
    %18 = vector.load %arg11[%17, %c0_15] : memref<64x384xf32, #tpu.memory_space<vmem>>, vector<8x384xf32>
    %cst_16 = arith.constant dense<0.000000e+00> : vector<8x384xf32>
    %19 = tpu.matmul %14, %10, %cst_16 {dimension_numbers = #tpu.dot_dimension_numbers<[1], [0], [0], [1], [0, 0, 1, 1], [], []>} : vector<8x128xf32>, vector<128x384xf32>, vector<8x384xf32> -> vector<8x384xf32>
    %20 = vector.extract_strided_slice %18 {offsets = [0, 0], sizes = [8, 128], strides = [1, 1]} : vector<8x384xf32> to vector<8x128xf32>
    %21 = vector.extract_strided_slice %19 {offsets = [0, 0], sizes = [8, 128], strides = [1, 1]} : vector<8x384xf32> to vector<8x128xf32>
    %22 = arith.addf %20, %21 : vector<8x128xf32>
    %23 = arith.negf %22 : vector<8x128xf32>
    %24 = math.exp %23 : vector<8x128xf32>
    %cst_17 = arith.constant 1.000000e+00 : f32
    %25 = vector.broadcast %cst_17 : f32 to vector<8x128xf32>
    %26 = arith.addf %25, %24 : vector<8x128xf32>
    %27 = arith.divf %25, %26 : vector<8x128xf32>
    %28 = vector.extract_strided_slice %18 {offsets = [0, 128], sizes = [8, 128], strides = [1, 1]} : vector<8x384xf32> to vector<8x128xf32>
    %29 = vector.extract_strided_slice %19 {offsets = [0, 128], sizes = [8, 128], strides = [1, 1]} : vector<8x384xf32> to vector<8x128xf32>
    %30 = arith.addf %28, %29 : vector<8x128xf32>
    %31 = arith.negf %30 : vector<8x128xf32>
    %32 = math.exp %31 : vector<8x128xf32>
    %cst_18 = arith.constant 1.000000e+00 : f32
    %33 = vector.broadcast %cst_18 : f32 to vector<8x128xf32>
    %34 = arith.addf %33, %32 : vector<8x128xf32>
    %35 = arith.divf %33, %34 : vector<8x128xf32>
    %36 = vector.extract_strided_slice %18 {offsets = [0, 256], sizes = [8, 128], strides = [1, 1]} : vector<8x384xf32> to vector<8x128xf32>
    %37 = vector.extract_strided_slice %19 {offsets = [0, 256], sizes = [8, 128], strides = [1, 1]} : vector<8x384xf32> to vector<8x128xf32>
    %38 = arith.addf %37, %13 : vector<8x128xf32>
    %39 = arith.mulf %27, %38 : vector<8x128xf32>
    %40 = arith.addf %36, %39 : vector<8x128xf32>
    %41 = math.tanh %40 : vector<8x128xf32>
    %cst_19 = arith.constant 1.000000e+00 : f32
    %42 = vector.broadcast %cst_19 : f32 to vector<8x128xf32>
    %43 = arith.subf %42, %35 : vector<8x128xf32>
    %44 = arith.mulf %43, %41 : vector<8x128xf32>
    %45 = arith.mulf %35, %14 : vector<8x128xf32>
    %46 = arith.addf %44, %45 : vector<8x128xf32>
    %47 = arith.index_cast %16 : i32 to index
    %c0_20 = arith.constant 0 : index
    %48 = vector.load %arg12[%47, %c0_20] : memref<64x128xf32, #tpu.memory_space<vmem>>, vector<8x128xf32>
    tpu.vector_store %arg12[%47, %c0_20], %46 {strides = array<i32>} : memref<64x128xf32, #tpu.memory_space<vmem>>, vector<8x128xf32>,
    %c1_i32 = arith.constant 1 : i32
    %c8_i32_21 = arith.constant 8 : i32
    %49 = arith.muli %c1_i32, %c8_i32_21 : i32
    %50 = tpu.assume_multiple %49, 8 : i32
    %51 = arith.index_cast %50 : i32 to index
    %c0_22 = arith.constant 0 : index
    %52 = vector.load %arg11[%51, %c0_22] : memref<64x384xf32, #tpu.memory_space<vmem>>, vector<8x384xf32>
    %cst_23 = arith.constant dense<0.000000e+00> : vector<8x384xf32>
    %53 = tpu.matmul %46, %10, %cst_23 {dimension_numbers = #tpu.dot_dimension_numbers<[1], [0], [0], [1], [0, 0, 1, 1], [], []>} : vector<8x128xf32>, vector<128x384xf32>, vector<8x384xf32> -> vector<8x384xf32>
    %54 = vector.extract_strided_slice %52 {offsets = [0, 0], sizes = [8, 128], strides = [1, 1]} : vector<8x384xf32> to vector<8x128xf32>
    %55 = vector.extract_strided_slice %53 {offsets = [0, 0], sizes = [8, 128], strides = [1, 1]} : vector<8x384xf32> to vector<8x128xf32>
    %56 = arith.addf %54, %55 : vector<8x128xf32>
    %57 = arith.negf %56 : vector<8x128xf32>
    %58 = math.exp %57 : vector<8x128xf32>
    %cst_24 = arith.constant 1.000000e+00 : f32
    %59 = vector.broadcast %cst_24 : f32 to vector<8x128xf32>
    %60 = arith.addf %59, %58 : vector<8x128xf32>
    %61 = arith.divf %59, %60 : vector<8x128xf32>
    %62 = vector.extract_strided_slice %52 {offsets = [0, 128], sizes = [8, 128], strides = [1, 1]} : vector<8x384xf32> to vector<8x128xf32>
    %63 = vector.extract_strided_slice %53 {offsets = [0, 128], sizes = [8, 128], strides = [1, 1]} : vector<8x384xf32> to vector<8x128xf32>
    %64 = arith.addf %62, %63 : vector<8x128xf32>
    %65 = arith.negf %64 : vector<8x128xf32>
    %66 = math.exp %65 : vector<8x128xf32>
    %cst_25 = arith.constant 1.000000e+00 : f32
    %67 = vector.broadcast %cst_25 : f32 to vector<8x128xf32>
    %68 = arith.addf %67, %66 : vector<8x128xf32>
    %69 = arith.divf %67, %68 : vector<8x128xf32>
    %70 = vector.extract_strided_slice %52 {offsets = [0, 256], sizes = [8, 128], strides = [1, 1]} : vector<8x384xf32> to vector<8x128xf32>
    %71 = vector.extract_strided_slice %53 {offsets = [0, 256], sizes = [8, 128], strides = [1, 1]} : vector<8x384xf32> to vector<8x128xf32>
    %72 = arith.addf %71, %13 : vector<8x128xf32>
    %73 = arith.mulf %61, %72 : vector<8x128xf32>
    %74 = arith.addf %70, %73 : vector<8x128xf32>
    %75 = math.tanh %74 : vector<8x128xf32>
    %cst_26 = arith.constant 1.000000e+00 : f32
    %76 = vector.broadcast %cst_26 : f32 to vector<8x128xf32>
    %77 = arith.subf %76, %69 : vector<8x128xf32>
    %78 = arith.mulf %77, %75 : vector<8x128xf32>
    %79 = arith.mulf %69, %46 : vector<8x128xf32>
    %80 = arith.addf %78, %79 : vector<8x128xf32>
    %81 = arith.index_cast %50 : i32 to index
    %c0_27 = arith.constant 0 : index
    %82 = vector.load %arg12[%81, %c0_27] : memref<64x128xf32, #tpu.memory_space<vmem>>, vector<8x128xf32>
    tpu.vector_store %arg12[%81, %c0_27], %80 {strides = array<i32>} : memref<64x128xf32, #tpu.memory_space<vmem>>, vector<8x128xf32>,
    %c2_i32 = arith.constant 2 : i32
    %c8_i32_28 = arith.constant 8 : i32
    %83 = arith.muli %c2_i32, %c8_i32_28 : i32
    %84 = tpu.assume_multiple %83, 8 : i32
    %85 = arith.index_cast %84 : i32 to index
    %c0_29 = arith.constant 0 : index
    %86 = vector.load %arg11[%85, %c0_29] : memref<64x384xf32, #tpu.memory_space<vmem>>, vector<8x384xf32>
    %cst_30 = arith.constant dense<0.000000e+00> : vector<8x384xf32>
    %87 = tpu.matmul %80, %10, %cst_30 {dimension_numbers = #tpu.dot_dimension_numbers<[1], [0], [0], [1], [0, 0, 1, 1], [], []>} : vector<8x128xf32>, vector<128x384xf32>, vector<8x384xf32> -> vector<8x384xf32>
    %88 = vector.extract_strided_slice %86 {offsets = [0, 0], sizes = [8, 128], strides = [1, 1]} : vector<8x384xf32> to vector<8x128xf32>
    %89 = vector.extract_strided_slice %87 {offsets = [0, 0], sizes = [8, 128], strides = [1, 1]} : vector<8x384xf32> to vector<8x128xf32>
    %90 = arith.addf %88, %89 : vector<8x128xf32>
    %91 = arith.negf %90 : vector<8x128xf32>
    %92 = math.exp %91 : vector<8x128xf32>
    %cst_31 = arith.constant 1.000000e+00 : f32
    %93 = vector.broadcast %cst_31 : f32 to vector<8x128xf32>
    %94 = arith.addf %93, %92 : vector<8x128xf32>
    %95 = arith.divf %93, %94 : vector<8x128xf32>
    %96 = vector.extract_strided_slice %86 {offsets = [0, 128], sizes = [8, 128], strides = [1, 1]} : vector<8x384xf32> to vector<8x128xf32>
    %97 = vector.extract_strided_slice %87 {offsets = [0, 128], sizes = [8, 128], strides = [1, 1]} : vector<8x384xf32> to vector<8x128xf32>
    %98 = arith.addf %96, %97 : vector<8x128xf32>
    %99 = arith.negf %98 : vector<8x128xf32>
    %100 = math.exp %99 : vector<8x128xf32>
    %cst_32 = arith.constant 1.000000e+00 : f32
    %101 = vector.broadcast %cst_32 : f32 to vector<8x128xf32>
    %102 = arith.addf %101, %100 : vector<8x128xf32>
    %103 = arith.divf %101, %102 : vector<8x128xf32>
    %104 = vector.extract_strided_slice %86 {offsets = [0, 256], sizes = [8, 128], strides = [1, 1]} : vector<8x384xf32> to vector<8x128xf32>
    %105 = vector.extract_strided_slice %87 {offsets = [0, 256], sizes = [8, 128], strides = [1, 1]} : vector<8x384xf32> to vector<8x128xf32>
    %106 = arith.addf %105, %13 : vector<8x128xf32>
    %107 = arith.mulf %95, %106 : vector<8x128xf32>
    %108 = arith.addf %104, %107 : vector<8x128xf32>
    %109 = math.tanh %108 : vector<8x128xf32>
    %cst_33 = arith.constant 1.000000e+00 : f32
    %110 = vector.broadcast %cst_33 : f32 to vector<8x128xf32>
    %111 = arith.subf %110, %103 : vector<8x128xf32>
    %112 = arith.mulf %111, %109 : vector<8x128xf32>
    %113 = arith.mulf %103, %80 : vector<8x128xf32>
    %114 = arith.addf %112, %113 : vector<8x128xf32>
    %115 = arith.index_cast %84 : i32 to index
    %c0_34 = arith.constant 0 : index
    %116 = vector.load %arg12[%115, %c0_34] : memref<64x128xf32, #tpu.memory_space<vmem>>, vector<8x128xf32>
    tpu.vector_store %arg12[%115, %c0_34], %114 {strides = array<i32>} : memref<64x128xf32, #tpu.memory_space<vmem>>, vector<8x128xf32>,
    %c3_i32 = arith.constant 3 : i32
    %c8_i32_35 = arith.constant 8 : i32
    %117 = arith.muli %c3_i32, %c8_i32_35 : i32
    %118 = tpu.assume_multiple %117, 8 : i32
    %119 = arith.index_cast %118 : i32 to index
    %c0_36 = arith.constant 0 : index
    %120 = vector.load %arg11[%119, %c0_36] : memref<64x384xf32, #tpu.memory_space<vmem>>, vector<8x384xf32>
    %cst_37 = arith.constant dense<0.000000e+00> : vector<8x384xf32>
    %121 = tpu.matmul %114, %10, %cst_37 {dimension_numbers = #tpu.dot_dimension_numbers<[1], [0], [0], [1], [0, 0, 1, 1], [], []>} : vector<8x128xf32>, vector<128x384xf32>, vector<8x384xf32> -> vector<8x384xf32>
    %122 = vector.extract_strided_slice %120 {offsets = [0, 0], sizes = [8, 128], strides = [1, 1]} : vector<8x384xf32> to vector<8x128xf32>
    %123 = vector.extract_strided_slice %121 {offsets = [0, 0], sizes = [8, 128], strides = [1, 1]} : vector<8x384xf32> to vector<8x128xf32>
    %124 = arith.addf %122, %123 : vector<8x128xf32>
    %125 = arith.negf %124 : vector<8x128xf32>
    %126 = math.exp %125 : vector<8x128xf32>
    %cst_38 = arith.constant 1.000000e+00 : f32
    %127 = vector.broadcast %cst_38 : f32 to vector<8x128xf32>
    %128 = arith.addf %127, %126 : vector<8x128xf32>
    %129 = arith.divf %127, %128 : vector<8x128xf32>
    %130 = vector.extract_strided_slice %120 {offsets = [0, 128], sizes = [8, 128], strides = [1, 1]} : vector<8x384xf32> to vector<8x128xf32>
    %131 = vector.extract_strided_slice %121 {offsets = [0, 128], sizes = [8, 128], strides = [1, 1]} : vector<8x384xf32> to vector<8x128xf32>
    %132 = arith.addf %130, %131 : vector<8x128xf32>
    %133 = arith.negf %132 : vector<8x128xf32>
    %134 = math.exp %133 : vector<8x128xf32>
    %cst_39 = arith.constant 1.000000e+00 : f32
    %135 = vector.broadcast %cst_39 : f32 to vector<8x128xf32>
    %136 = arith.addf %135, %134 : vector<8x128xf32>
    %137 = arith.divf %135, %136 : vector<8x128xf32>
    %138 = vector.extract_strided_slice %120 {offsets = [0, 256], sizes = [8, 128], strides = [1, 1]} : vector<8x384xf32> to vector<8x128xf32>
    %139 = vector.extract_strided_slice %121 {offsets = [0, 256], sizes = [8, 128], strides = [1, 1]} : vector<8x384xf32> to vector<8x128xf32>
    %140 = arith.addf %139, %13 : vector<8x128xf32>
    %141 = arith.mulf %129, %140 : vector<8x128xf32>
    %142 = arith.addf %138, %141 : vector<8x128xf32>
    %143 = math.tanh %142 : vector<8x128xf32>
    %cst_40 = arith.constant 1.000000e+00 : f32
    %144 = vector.broadcast %cst_40 : f32 to vector<8x128xf32>
    %145 = arith.subf %144, %137 : vector<8x128xf32>
    %146 = arith.mulf %145, %143 : vector<8x128xf32>
    %147 = arith.mulf %137, %114 : vector<8x128xf32>
    %148 = arith.addf %146, %147 : vector<8x128xf32>
    %149 = arith.index_cast %118 : i32 to index
    %c0_41 = arith.constant 0 : index
    %150 = vector.load %arg12[%149, %c0_41] : memref<64x128xf32, #tpu.memory_space<vmem>>, vector<8x128xf32>
    tpu.vector_store %arg12[%149, %c0_41], %148 {strides = array<i32>} : memref<64x128xf32, #tpu.memory_space<vmem>>, vector<8x128xf32>,
    %c4_i32 = arith.constant 4 : i32
    %c8_i32_42 = arith.constant 8 : i32
    %151 = arith.muli %c4_i32, %c8_i32_42 : i32
    %152 = tpu.assume_multiple %151, 8 : i32
    %153 = arith.index_cast %152 : i32 to index
    %c0_43 = arith.constant 0 : index
    %154 = vector.load %arg11[%153, %c0_43] : memref<64x384xf32, #tpu.memory_space<vmem>>, vector<8x384xf32>
    %cst_44 = arith.constant dense<0.000000e+00> : vector<8x384xf32>
    %155 = tpu.matmul %148, %10, %cst_44 {dimension_numbers = #tpu.dot_dimension_numbers<[1], [0], [0], [1], [0, 0, 1, 1], [], []>} : vector<8x128xf32>, vector<128x384xf32>, vector<8x384xf32> -> vector<8x384xf32>
    %156 = vector.extract_strided_slice %154 {offsets = [0, 0], sizes = [8, 128], strides = [1, 1]} : vector<8x384xf32> to vector<8x128xf32>
    %157 = vector.extract_strided_slice %155 {offsets = [0, 0], sizes = [8, 128], strides = [1, 1]} : vector<8x384xf32> to vector<8x128xf32>
    %158 = arith.addf %156, %157 : vector<8x128xf32>
    %159 = arith.negf %158 : vector<8x128xf32>
    %160 = math.exp %159 : vector<8x128xf32>
    %cst_45 = arith.constant 1.000000e+00 : f32
    %161 = vector.broadcast %cst_45 : f32 to vector<8x128xf32>
    %162 = arith.addf %161, %160 : vector<8x128xf32>
    %163 = arith.divf %161, %162 : vector<8x128xf32>
    %164 = vector.extract_strided_slice %154 {offsets = [0, 128], sizes = [8, 128], strides = [1, 1]} : vector<8x384xf32> to vector<8x128xf32>
    %165 = vector.extract_strided_slice %155 {offsets = [0, 128], sizes = [8, 128], strides = [1, 1]} : vector<8x384xf32> to vector<8x128xf32>
    %166 = arith.addf %164, %165 : vector<8x128xf32>
    %167 = arith.negf %166 : vector<8x128xf32>
    %168 = math.exp %167 : vector<8x128xf32>
    %cst_46 = arith.constant 1.000000e+00 : f32
    %169 = vector.broadcast %cst_46 : f32 to vector<8x128xf32>
    %170 = arith.addf %169, %168 : vector<8x128xf32>
    %171 = arith.divf %169, %170 : vector<8x128xf32>
    %172 = vector.extract_strided_slice %154 {offsets = [0, 256], sizes = [8, 128], strides = [1, 1]} : vector<8x384xf32> to vector<8x128xf32>
    %173 = vector.extract_strided_slice %155 {offsets = [0, 256], sizes = [8, 128], strides = [1, 1]} : vector<8x384xf32> to vector<8x128xf32>
    %174 = arith.addf %173, %13 : vector<8x128xf32>
    %175 = arith.mulf %163, %174 : vector<8x128xf32>
    %176 = arith.addf %172, %175 : vector<8x128xf32>
    %177 = math.tanh %176 : vector<8x128xf32>
    %cst_47 = arith.constant 1.000000e+00 : f32
    %178 = vector.broadcast %cst_47 : f32 to vector<8x128xf32>
    %179 = arith.subf %178, %171 : vector<8x128xf32>
    %180 = arith.mulf %179, %177 : vector<8x128xf32>
    %181 = arith.mulf %171, %148 : vector<8x128xf32>
    %182 = arith.addf %180, %181 : vector<8x128xf32>
    %183 = arith.index_cast %152 : i32 to index
    %c0_48 = arith.constant 0 : index
    %184 = vector.load %arg12[%183, %c0_48] : memref<64x128xf32, #tpu.memory_space<vmem>>, vector<8x128xf32>
    tpu.vector_store %arg12[%183, %c0_48], %182 {strides = array<i32>} : memref<64x128xf32, #tpu.memory_space<vmem>>, vector<8x128xf32>,
    %c5_i32 = arith.constant 5 : i32
    %c8_i32_49 = arith.constant 8 : i32
    %185 = arith.muli %c5_i32, %c8_i32_49 : i32
    %186 = tpu.assume_multiple %185, 8 : i32
    %187 = arith.index_cast %186 : i32 to index
    %c0_50 = arith.constant 0 : index
    %188 = vector.load %arg11[%187, %c0_50] : memref<64x384xf32, #tpu.memory_space<vmem>>, vector<8x384xf32>
    %cst_51 = arith.constant dense<0.000000e+00> : vector<8x384xf32>
    %189 = tpu.matmul %182, %10, %cst_51 {dimension_numbers = #tpu.dot_dimension_numbers<[1], [0], [0], [1], [0, 0, 1, 1], [], []>} : vector<8x128xf32>, vector<128x384xf32>, vector<8x384xf32> -> vector<8x384xf32>
    %190 = vector.extract_strided_slice %188 {offsets = [0, 0], sizes = [8, 128], strides = [1, 1]} : vector<8x384xf32> to vector<8x128xf32>
    %191 = vector.extract_strided_slice %189 {offsets = [0, 0], sizes = [8, 128], strides = [1, 1]} : vector<8x384xf32> to vector<8x128xf32>
    %192 = arith.addf %190, %191 : vector<8x128xf32>
    %193 = arith.negf %192 : vector<8x128xf32>
    %194 = math.exp %193 : vector<8x128xf32>
    %cst_52 = arith.constant 1.000000e+00 : f32
    %195 = vector.broadcast %cst_52 : f32 to vector<8x128xf32>
    %196 = arith.addf %195, %194 : vector<8x128xf32>
    %197 = arith.divf %195, %196 : vector<8x128xf32>
    %198 = vector.extract_strided_slice %188 {offsets = [0, 128], sizes = [8, 128], strides = [1, 1]} : vector<8x384xf32> to vector<8x128xf32>
    %199 = vector.extract_strided_slice %189 {offsets = [0, 128], sizes = [8, 128], strides = [1, 1]} : vector<8x384xf32> to vector<8x128xf32>
    %200 = arith.addf %198, %199 : vector<8x128xf32>
    %201 = arith.negf %200 : vector<8x128xf32>
    %202 = math.exp %201 : vector<8x128xf32>
    %cst_53 = arith.constant 1.000000e+00 : f32
    %203 = vector.broadcast %cst_53 : f32 to vector<8x128xf32>
    %204 = arith.addf %203, %202 : vector<8x128xf32>
    %205 = arith.divf %203, %204 : vector<8x128xf32>
    %206 = vector.extract_strided_slice %188 {offsets = [0, 256], sizes = [8, 128], strides = [1, 1]} : vector<8x384xf32> to vector<8x128xf32>
    %207 = vector.extract_strided_slice %189 {offsets = [0, 256], sizes = [8, 128], strides = [1, 1]} : vector<8x384xf32> to vector<8x128xf32>
    %208 = arith.addf %207, %13 : vector<8x128xf32>
    %209 = arith.mulf %197, %208 : vector<8x128xf32>
    %210 = arith.addf %206, %209 : vector<8x128xf32>
    %211 = math.tanh %210 : vector<8x128xf32>
    %cst_54 = arith.constant 1.000000e+00 : f32
    %212 = vector.broadcast %cst_54 : f32 to vector<8x128xf32>
    %213 = arith.subf %212, %205 : vector<8x128xf32>
    %214 = arith.mulf %213, %211 : vector<8x128xf32>
    %215 = arith.mulf %205, %182 : vector<8x128xf32>
    %216 = arith.addf %214, %215 : vector<8x128xf32>
    %217 = arith.index_cast %186 : i32 to index
    %c0_55 = arith.constant 0 : index
    %218 = vector.load %arg12[%217, %c0_55] : memref<64x128xf32, #tpu.memory_space<vmem>>, vector<8x128xf32>
    tpu.vector_store %arg12[%217, %c0_55], %216 {strides = array<i32>} : memref<64x128xf32, #tpu.memory_space<vmem>>, vector<8x128xf32>,
    %c6_i32 = arith.constant 6 : i32
    %c8_i32_56 = arith.constant 8 : i32
    %219 = arith.muli %c6_i32, %c8_i32_56 : i32
    %220 = tpu.assume_multiple %219, 8 : i32
    %221 = arith.index_cast %220 : i32 to index
    %c0_57 = arith.constant 0 : index
    %222 = vector.load %arg11[%221, %c0_57] : memref<64x384xf32, #tpu.memory_space<vmem>>, vector<8x384xf32>
    %cst_58 = arith.constant dense<0.000000e+00> : vector<8x384xf32>
    %223 = tpu.matmul %216, %10, %cst_58 {dimension_numbers = #tpu.dot_dimension_numbers<[1], [0], [0], [1], [0, 0, 1, 1], [], []>} : vector<8x128xf32>, vector<128x384xf32>, vector<8x384xf32> -> vector<8x384xf32>
    %224 = vector.extract_strided_slice %222 {offsets = [0, 0], sizes = [8, 128], strides = [1, 1]} : vector<8x384xf32> to vector<8x128xf32>
    %225 = vector.extract_strided_slice %223 {offsets = [0, 0], sizes = [8, 128], strides = [1, 1]} : vector<8x384xf32> to vector<8x128xf32>
    %226 = arith.addf %224, %225 : vector<8x128xf32>
    %227 = arith.negf %226 : vector<8x128xf32>
    %228 = math.exp %227 : vector<8x128xf32>
    %cst_59 = arith.constant 1.000000e+00 : f32
    %229 = vector.broadcast %cst_59 : f32 to vector<8x128xf32>
    %230 = arith.addf %229, %228 : vector<8x128xf32>
    %231 = arith.divf %229, %230 : vector<8x128xf32>
    %232 = vector.extract_strided_slice %222 {offsets = [0, 128], sizes = [8, 128], strides = [1, 1]} : vector<8x384xf32> to vector<8x128xf32>
    %233 = vector.extract_strided_slice %223 {offsets = [0, 128], sizes = [8, 128], strides = [1, 1]} : vector<8x384xf32> to vector<8x128xf32>
    %234 = arith.addf %232, %233 : vector<8x128xf32>
    %235 = arith.negf %234 : vector<8x128xf32>
    %236 = math.exp %235 : vector<8x128xf32>
    %cst_60 = arith.constant 1.000000e+00 : f32
    %237 = vector.broadcast %cst_60 : f32 to vector<8x128xf32>
    %238 = arith.addf %237, %236 : vector<8x128xf32>
    %239 = arith.divf %237, %238 : vector<8x128xf32>
    %240 = vector.extract_strided_slice %222 {offsets = [0, 256], sizes = [8, 128], strides = [1, 1]} : vector<8x384xf32> to vector<8x128xf32>
    %241 = vector.extract_strided_slice %223 {offsets = [0, 256], sizes = [8, 128], strides = [1, 1]} : vector<8x384xf32> to vector<8x128xf32>
    %242 = arith.addf %241, %13 : vector<8x128xf32>
    %243 = arith.mulf %231, %242 : vector<8x128xf32>
    %244 = arith.addf %240, %243 : vector<8x128xf32>
    %245 = math.tanh %244 : vector<8x128xf32>
    %cst_61 = arith.constant 1.000000e+00 : f32
    %246 = vector.broadcast %cst_61 : f32 to vector<8x128xf32>
    %247 = arith.subf %246, %239 : vector<8x128xf32>
    %248 = arith.mulf %247, %245 : vector<8x128xf32>
    %249 = arith.mulf %239, %216 : vector<8x128xf32>
    %250 = arith.addf %248, %249 : vector<8x128xf32>
    %251 = arith.index_cast %220 : i32 to index
    %c0_62 = arith.constant 0 : index
    %252 = vector.load %arg12[%251, %c0_62] : memref<64x128xf32, #tpu.memory_space<vmem>>, vector<8x128xf32>
    tpu.vector_store %arg12[%251, %c0_62], %250 {strides = array<i32>} : memref<64x128xf32, #tpu.memory_space<vmem>>, vector<8x128xf32>,
    %c7_i32 = arith.constant 7 : i32
    %c8_i32_63 = arith.constant 8 : i32
    %253 = arith.muli %c7_i32, %c8_i32_63 : i32
    %254 = tpu.assume_multiple %253, 8 : i32
    %255 = arith.index_cast %254 : i32 to index
    %c0_64 = arith.constant 0 : index
    %256 = vector.load %arg11[%255, %c0_64] : memref<64x384xf32, #tpu.memory_space<vmem>>, vector<8x384xf32>
    %cst_65 = arith.constant dense<0.000000e+00> : vector<8x384xf32>
    %257 = tpu.matmul %250, %10, %cst_65 {dimension_numbers = #tpu.dot_dimension_numbers<[1], [0], [0], [1], [0, 0, 1, 1], [], []>} : vector<8x128xf32>, vector<128x384xf32>, vector<8x384xf32> -> vector<8x384xf32>
    %258 = vector.extract_strided_slice %256 {offsets = [0, 0], sizes = [8, 128], strides = [1, 1]} : vector<8x384xf32> to vector<8x128xf32>
    %259 = vector.extract_strided_slice %257 {offsets = [0, 0], sizes = [8, 128], strides = [1, 1]} : vector<8x384xf32> to vector<8x128xf32>
    %260 = arith.addf %258, %259 : vector<8x128xf32>
    %261 = arith.negf %260 : vector<8x128xf32>
    %262 = math.exp %261 : vector<8x128xf32>
    %cst_66 = arith.constant 1.000000e+00 : f32
    %263 = vector.broadcast %cst_66 : f32 to vector<8x128xf32>
    %264 = arith.addf %263, %262 : vector<8x128xf32>
    %265 = arith.divf %263, %264 : vector<8x128xf32>
    %266 = vector.extract_strided_slice %256 {offsets = [0, 128], sizes = [8, 128], strides = [1, 1]} : vector<8x384xf32> to vector<8x128xf32>
    %267 = vector.extract_strided_slice %257 {offsets = [0, 128], sizes = [8, 128], strides = [1, 1]} : vector<8x384xf32> to vector<8x128xf32>
    %268 = arith.addf %266, %267 : vector<8x128xf32>
    %269 = arith.negf %268 : vector<8x128xf32>
    %270 = math.exp %269 : vector<8x128xf32>
    %cst_67 = arith.constant 1.000000e+00 : f32
    %271 = vector.broadcast %cst_67 : f32 to vector<8x128xf32>
    %272 = arith.addf %271, %270 : vector<8x128xf32>
    %273 = arith.divf %271, %272 : vector<8x128xf32>
    %274 = vector.extract_strided_slice %256 {offsets = [0, 256], sizes = [8, 128], strides = [1, 1]} : vector<8x384xf32> to vector<8x128xf32>
    %275 = vector.extract_strided_slice %257 {offsets = [0, 256], sizes = [8, 128], strides = [1, 1]} : vector<8x384xf32> to vector<8x128xf32>
    %276 = arith.addf %275, %13 : vector<8x128xf32>
    %277 = arith.mulf %265, %276 : vector<8x128xf32>
    %278 = arith.addf %274, %277 : vector<8x128xf32>
    %279 = math.tanh %278 : vector<8x128xf32>
    %cst_68 = arith.constant 1.000000e+00 : f32
    %280 = vector.broadcast %cst_68 : f32 to vector<8x128xf32>
    %281 = arith.subf %280, %273 : vector<8x128xf32>
    %282 = arith.mulf %281, %279 : vector<8x128xf32>
    %283 = arith.mulf %273, %250 : vector<8x128xf32>
    %284 = arith.addf %282, %283 : vector<8x128xf32>
    %285 = arith.index_cast %254 : i32 to index
    %c0_69 = arith.constant 0 : index
    %286 = vector.load %arg12[%285, %c0_69] : memref<64x128xf32, #tpu.memory_space<vmem>>, vector<8x128xf32>
    tpu.vector_store %arg12[%285, %c0_69], %284 {strides = array<i32>} : memref<64x128xf32, #tpu.memory_space<vmem>>, vector<8x128xf32>,
    %c8_i32_70 = arith.constant 8 : i32
    %c0_71 = arith.constant 0 : index
    %c0_72 = arith.constant 0 : index
    %287 = vector.load %arg10[%c0_71, %c0_72] : memref<8x128xf32, #tpu.memory_space<vmem>>, vector<8x128xf32>
    tpu.vector_store %arg10[%c0_71, %c0_72], %284 {strides = array<i32>} : memref<8x128xf32, #tpu.memory_space<vmem>>, vector<8x128xf32>,
    %c0_73 = arith.constant 0 : index
    %c0_74 = arith.constant 0 : index
    %288 = vector.load %arg12[%c0_73, %c0_74] : memref<64x128xf32, #tpu.memory_space<vmem>>, vector<64x128xf32>
    %c0_75 = arith.constant 0 : index
    %c0_76 = arith.constant 0 : index
    %289 = vector.load %arg7[%c0_75, %c0_76] : memref<128x128xf32, #tpu.memory_space<vmem>>, vector<128x128xf32>
    %cst_77 = arith.constant dense<0.000000e+00> : vector<64x128xf32>
    %290 = tpu.matmul %288, %289, %cst_77 {dimension_numbers = #tpu.dot_dimension_numbers<[1], [0], [0], [1], [0, 0, 1, 1], [], []>} : vector<64x128xf32>, vector<128x128xf32>, vector<64x128xf32> -> vector<64x128xf32>
    %c0_78 = arith.constant 0 : index
    %c0_79 = arith.constant 0 : index
    %291 = vector.load %arg8[%c0_78, %c0_79] : memref<1x128xf32, #tpu.memory_space<vmem>>, vector<1x128xf32>
    %292 = vector.broadcast %291 : vector<1x128xf32> to vector<64x128xf32>
    %293 = arith.addf %290, %292 : vector<64x128xf32>
    %c0_80 = arith.constant 0 : index
    %c0_81 = arith.constant 0 : index
    %294 = vector.load %arg2[%c0_80, %c0_81] : memref<64x4xf32, #tpu.memory_space<vmem>>, vector<64x1xf32>
    %295 = vector.broadcast %294 : vector<64x1xf32> to vector<64x128xf32>
    %296 = arith.addf %293, %295 : vector<64x128xf32>
    %c0_82 = arith.constant 0 : index
    %c0_83 = arith.constant 0 : index
    %297 = vector.load %arg9[%c0_82, %c0_83] : memref<64x128xf32, #tpu.memory_space<vmem>>, vector<64x128xf32>
    tpu.vector_store %arg9[%c0_82, %c0_83], %296 {strides = array<i32>} : memref<64x128xf32, #tpu.memory_space<vmem>>, vector<64x128xf32>,
    return
  }
  func.func @transform_0(%arg0: i32, %arg1: i32) -> (i32, i32) {
    %c1_i32 = arith.constant 1 : i32
    %0 = arith.muli %arg0, %c1_i32 : i32
    %1 = arith.addi %0, %arg1 : i32
    %c0_i32 = arith.constant 0 : i32
    %c0_i32_0 = arith.constant 0 : i32
    return %1, %c0_i32 : i32, i32
  }
  func.func @transform_1(%arg0: i32, %arg1: i32) -> (i32, i32) {
    %c0_i32 = arith.constant 0 : i32
    %c0_i32_0 = arith.constant 0 : i32
    %c0_i32_1 = arith.constant 0 : i32
    return %c0_i32, %c0_i32_0 : i32, i32
  }
  func.func @transform_2(%arg0: i32, %arg1: i32) -> (i32, i32) {
    %c0_i32 = arith.constant 0 : i32
    %c0_i32_0 = arith.constant 0 : i32
    %c0_i32_1 = arith.constant 0 : i32
    return %c0_i32, %c0_i32_0 : i32, i32
  }
  func.func @transform_3(%arg0: i32, %arg1: i32) -> (i32, i32) {
    %c0_i32 = arith.constant 0 : i32
    %c0_i32_0 = arith.constant 0 : i32
    %c0_i32_1 = arith.constant 0 : i32
    return %c0_i32, %c0_i32_0 : i32, i32
  }
  func.func @transform_4(%arg0: i32, %arg1: i32) -> (i32, i32) {
    %c0_i32 = arith.constant 0 : i32
    %c0_i32_0 = arith.constant 0 : i32
    %c0_i32_1 = arith.constant 0 : i32
    return %c0_i32, %c0_i32_0 : i32, i32
  }
  func.func @transform_5(%arg0: i32, %arg1: i32) -> (i32, i32) {
    %c0_i32 = arith.constant 0 : i32
    %c0_i32_0 = arith.constant 0 : i32
    %c0_i32_1 = arith.constant 0 : i32
    return %c0_i32, %c0_i32_0 : i32, i32
  }
  func.func @transform_6(%arg0: i32, %arg1: i32) -> (i32, i32) {
    %c0_i32 = arith.constant 0 : i32
    %c0_i32_0 = arith.constant 0 : i32
    %c0_i32_1 = arith.constant 0 : i32
    return %c0_i32, %c0_i32_0 : i32, i32
  }
  func.func @transform_7(%arg0: i32, %arg1: i32) -> (i32, i32) {
    %c1_i32 = arith.constant 1 : i32
    %0 = arith.muli %arg0, %c1_i32 : i32
    %1 = arith.addi %0, %arg1 : i32
    %c0_i32 = arith.constant 0 : i32
    %c0_i32_0 = arith.constant 0 : i32
    return %1, %c0_i32 : i32, i32
  }
}

</mosaic_0001>

<llo_original>
// kernel: tpu_custom_call.1
$region0: #{tpu_custom_call.1}
  #allocation0 [shape = 'u32[]', space=smem, size = 0x4, offset = 0x4, fixed_abs, tag = 'smem constant byte address 0x4 - core index']
  #allocation1 [shape = 'u32[144,128]{1,0:T(1,128)}', space=vmem, size = 0x12000, scoped, tag = 'internal scratch']
  #allocation2 [shape = 'f32[8,128]{1,0:T(8,128)}', space=vmem, size = 0x1000, scoped, tag = 'scratch operand']
  #allocation3 [shape = 'f32[64,384]{1,0:T(8,128)}', space=vmem, size = 0x18000, scoped, tag = 'scratch operand']
  #allocation4 [shape = 'f32[64,128]{1,0:T(8,128)}', space=vmem, size = 0x8000, scoped, tag = 'scratch operand']
  %s0 = inlined_call_operand.vmem [shape: f32[64,4], index: 0, kind: input, shape index: {}]
  %s1 = inlined_call_operand.vmem [shape: f32[4,384], index: 1, kind: input, shape index: {}]
  %s2 = inlined_call_operand.hbm [shape: f32[128,384], index: 2, kind: input, shape index: {}]
  %s3 = inlined_call_operand.vmem [shape: f32[1,384], index: 3, kind: input, shape index: {}]
  %s4 = inlined_call_operand.vmem [shape: f32[1,128], index: 4, kind: input, shape index: {}]
  %s5 = inlined_call_operand.hbm [shape: f32[128,128], index: 5, kind: input, shape index: {}]
  %s6 = inlined_call_operand.vmem [shape: f32[1,128], index: 6, kind: input, shape index: {}]
  %s7 = inlined_call_operand.hbm [shape: f32[64,128], index: 7, kind: output, shape index: {}]
  %s8 = sld [smem:[#allocation0]]
  $region50: #{tpu_custom_call.1} parent=0
    _
  %s10 = ssub.s32 1, %s8
  %s11 = scalar_select 0, %s10, %s8
  $region1: #{tpu_custom_call.1} parent=0
    #allocation5 [shape = 'u8[196608]{0}', space=vmem, size = 0x30000, scoped, tag = 'input window, operand 2, single buffered']
    #allocation6 [shape = 's32[1]{0}', space=sflag, size = 0x4, scoped, tag = 'scoped memory for tpu_custom_call.1']
    #allocation7 [shape = 's32[1]{0}', space=sflag, size = 0x4, scoped, tag = 'scoped memory for tpu_custom_call.1']
    #allocation8 [shape = 'u8[65536]{0}', space=vmem, size = 0x10000, scoped, tag = 'input window, operand 5, single buffered']
    #allocation9 [shape = 's32[1]{0}', space=sflag, size = 0x4, scoped, tag = 'scoped memory for tpu_custom_call.1']
    #allocation10 [shape = 'u8[32768]{0}', space=vmem, size = 0x8000, scoped, tag = 'output window, operand 0, single buffered']
    %12 = vsyncpa [#allocation6], 0
    %13 = vsyncpa [#allocation9], 0
    %14 = vsyncpa [#allocation7], 0
    // Predicated region
    $region2: #{tpu_custom_call.1} parent=1 // pred_check
      _
    $region3: #{tpu_custom_call.1} parent=1 // pred_check_branch
      %16 = sbr.rel (0) target = $region5
    $region4: #{tpu_custom_call.1} parent=1 // pred_region
      %s17 = sadd.s32 0, 0
      %s18 = smul.u32 8, %s17
      %p19 = scmp.lt.s32.totalorder %s18, 7
      %s20 = scalar_select %p19, %s18, 7
      %s21 = smul.addr %s20, 8
      %s22 = scalar_lea.vmem %s0, %s21
      %s23 = sadd.s32 0, 0
      %s24 = smul.u32 8, %s23
    $region5: #{tpu_custom_call.1} parent=1 // pred_fallthru
      _
    // Predicated region
    $region6: #{tpu_custom_call.1} parent=1 // pred_check
      _
    $region7: #{tpu_custom_call.1} parent=1 // pred_check_branch
      %26 = sbr.rel (0) target = $region9
    $region8: #{tpu_custom_call.1} parent=1 // pred_region
      _
    $region9: #{tpu_custom_call.1} parent=1 // pred_fallthru
      _
    // Predicated region
    $region10: #{tpu_custom_call.1} parent=1 // pred_check
      _
    $region11: #{tpu_custom_call.1} parent=1 // pred_check_branch
      %28 = sbr.rel (0) target = $region13
    $region12: #{tpu_custom_call.1} parent=1 // pred_region
      %s30 = ssub.s32 6144, 6144
      %31 = vsyncadd [#allocation6], %s30
      %s32 = sshll.u32 [#allocation5], 4
      %s33 = int_to_ptr.vmem [resolvable:$true] %s32
      %38 = dma.hbm_to_vmem [thread:$0]  %s2, 6144, %s33, [#allocation6], 384, 384, 24
    $region13: #{tpu_custom_call.1} parent=1 // pred_fallthru
      _
    // Predicated region
    $region14: #{tpu_custom_call.1} parent=1 // pred_check
      _
    $region15: #{tpu_custom_call.1} parent=1 // pred_check_branch
      %40 = sbr.rel (0) target = $region17
    $region16: #{tpu_custom_call.1} parent=1 // pred_region
      _
    $region17: #{tpu_custom_call.1} parent=1 // pred_fallthru
      _
    // Predicated region
    $region18: #{tpu_custom_call.1} parent=1 // pred_check
      _
    $region19: #{tpu_custom_call.1} parent=1 // pred_check_branch
      %42 = sbr.rel (0) target = $region21
    $region20: #{tpu_custom_call.1} parent=1 // pred_region
      _
    $region21: #{tpu_custom_call.1} parent=1 // pred_fallthru
      _
    // Predicated region
    $region22: #{tpu_custom_call.1} parent=1 // pred_check
      _
    $region23: #{tpu_custom_call.1} parent=1 // pred_check_branch
      %44 = sbr.rel (0) target = $region25
    $region24: #{tpu_custom_call.1} parent=1 // pred_region
      %s46 = ssub.s32 2048, 2048
      %47 = vsyncadd [#allocation9], %s46
      %s48 = sshll.u32 [#allocation8], 4
      %s49 = int_to_ptr.vmem [resolvable:$true] %s48
      %54 = dma.hbm_to_vmem [thread:$0]  %s5, 2048, %s49, [#allocation9], 128, 128, 8
    $region25: #{tpu_custom_call.1} parent=1 // pred_fallthru
      _
    // Predicated region
    $region26: #{tpu_custom_call.1} parent=1 // pred_check
      _
    $region27: #{tpu_custom_call.1} parent=1 // pred_check_branch
      %56 = sbr.rel (0) target = $region29
    $region28: #{tpu_custom_call.1} parent=1 // pred_region
      _
    $region29: #{tpu_custom_call.1} parent=1 // pred_fallthru
      _
    // Predicated region
    $region30: #{tpu_custom_call.1} parent=1 // pred_check
      _
    $region31: #{tpu_custom_call.1} parent=1 // pred_check_branch
      %58 = sbr.rel (0) target = $region33
    $region32: #{tpu_custom_call.1} parent=1 // pred_region
      %59 = dma.done [#allocation6], 6144
    $region33: #{tpu_custom_call.1} parent=1 // pred_fallthru
      _
    // Predicated region
    $region34: #{tpu_custom_call.1} parent=1 // pred_check
      _
    $region35: #{tpu_custom_call.1} parent=1 // pred_check_branch
      %61 = sbr.rel (0) target = $region37
    $region36: #{tpu_custom_call.1} parent=1 // pred_region
      %62 = dma.done [#allocation9], 2048
    $region37: #{tpu_custom_call.1} parent=1 // pred_fallthru
      _
    %s63 = sadd.s32 0, 0
    %s64 = smul.u32 8, %s63
    %p65 = scmp.lt.s32.totalorder %s64, 7
    %s66 = scalar_select %p65, %s64, 7
    %s67 = smul.addr %s66, 8
    %s68 = scalar_lea.vmem %s0, %s67
    %s69 = sadd.s32 0, 0
    %s70 = smul.u32 8, %s69
    %p71 = scmp.lt.s32.totalorder %s70, 7
    %s72 = scalar_select %p71, %s70, 7
    %s73 = smul.addr %s72, 8
    %s74 = scalar_lea.vmem %s0, %s73
    %s75 = sadd.s32 0, 0
    %s76 = smul.u32 8, %s75
    %s77 = sadd.s32 0, 0
    %s78 = smul.u32 8, %s77
    %p79 = scmp.eq.s32.totalorder 0, 0
    // Predicated region
    $region38: #{tpu_custom_call.1} parent=1 // pred_check
      %p80 = pneg %p79
    $region39: #{tpu_custom_call.1} parent=1 // pred_check_branch
      %82 = sbr.rel (%p80) target = $region41
    $region40: #{tpu_custom_call.1} parent=1 // pred_region
      %83 = vst [vmem:[#allocation2] sm:$0xff] 0.0
    $region41: #{tpu_custom_call.1} parent=1 // pred_fallthru
      _
    %v84 = vld [vmem:[%s74] sm:$0xff]
    %v85 = vld [vmem:[%s74 + $0x8] sm:$0xff]
    %v86 = vld [vmem:[%s74 + $0x10] sm:$0xff]
    %v87 = vld [vmem:[%s74 + $0x18] sm:$0xff]
    %v88 = vld [vmem:[%s74 + $0x20] sm:$0xff]
    %v89 = vld [vmem:[%s74 + $0x28] sm:$0xff]
    %v90 = vld [vmem:[%s74 + $0x30] sm:$0xff]
    %v91 = vld [vmem:[%s74 + $0x38] sm:$0xff]
    %v92 = vld [vmem:[%s1] sm:$0xff]
    %v93 = vld [vmem:[%s1 + $0x8] sm:$0xf]
    %v94 = vld [vmem:[%s3] sm:$0x7]
    %v96 = vlaneseq
    %v97 = vshrl.u32 %v96, 7
    %v98 = vsub.s32 0, %v97
    %v99 = vrot.slane %v94, %v98
    %v100 = vlaneseq
    %v101 = vshrl.u32 %v100, 7
    %v102 = vsub.s32 1, %v101
    %v103 = vrot.slane %v94, %v102
    %v104 = vlaneseq
    %v105 = vshrl.u32 %v104, 7
    %v106 = vsub.s32 2, %v105
    %v107 = vrot.slane %v94, %v106
    %v113 = vcombine.high %v92, %v92
    %vm114 = vcmask 31744
    %v116 = vsel %vm114, %v84, 0
    %v119 = vsel %vm114, %v85, 0
    %v122 = vsel %vm114, %v86, 0
    %v125 = vsel %vm114, %v87, 0
    %v128 = vsel %vm114, %v88, 0
    %v131 = vsel %vm114, %v89, 0
    %v134 = vsel %vm114, %v90, 0
    %v137 = vsel %vm114, %v91, 0
    %vm139 = vcmask 1043456
    %v140 = vsel %vm139, %v92, 0
    %v142 = vsel %vm139, %v113, 0
    %v144 = vsel %vm139, %v93, 0
    %146 = vmatprep.subr.mxu0 %v142
    %147 = vmatpush1.msra.mxu0 %v140
    %148 = vmatprep.subr.mxu0 0.0
    %149 = vmatpush1.msra.mxu0 0.0
    %150 = vmatprep.subr.mxu0 0.0
    %151 = vmatpush1.msra.mxu0 0.0
    %152 = vmatprep.subr.mxu0 0.0
    %153 = vmatpush1.msra.mxu0 0.0
    %154 = vmatprep.subr.mxu0 0.0
    %155 = vmatpush1.msra.mxu0 0.0
    %156 = vmatprep.subr.mxu0 0.0
    %157 = vmatpush1.msra.mxu0 0.0
    %158 = vmatprep.subr.mxu0 0.0
    %159 = vmatpush1.msra.mxu0 0.0
    %160 = vmatprep.subr.mxu0 0.0
    %161 = vmatpush1.msra.mxu0 0.0
    %162 = vmatprep.subr.mxu0 0.0
    %163 = vmatpush1.msra.mxu0 0.0
    %164 = vmatprep.subr.mxu0 0.0
    %165 = vmatpush1.msra.mxu0 0.0
    %166 = vmatprep.subr.mxu0 0.0
    %167 = vmatpush1.msra.mxu0 0.0
    %168 = vmatprep.subr.mxu0 0.0
    %169 = vmatpush1.msra.mxu0 0.0
    %170 = vmatprep.subr.mxu0 0.0
    %171 = vmatpush1.msra.mxu0 0.0
    %172 = vmatprep.subr.mxu0 0.0
    %173 = vmatpush1.msra.mxu0 0.0
    %174 = vmatprep.subr.mxu0 0.0
    %175 = vmatpush1.msra.mxu0 0.0
    %176 = vmatprep.subr.mxu0 0.0
    %177 = vmatpush1.msra.mxu0 0.0
    %178 = vmatprep.subr.mxu0 0.0
    %179 = vmatpush1.msra.mxu0 0.0
    %180 = vmatprep.subr.mxu0 0.0
    %181 = vmatpush1.msra.mxu0 0.0
    %182 = vmatprep.subr.mxu0 0.0
    %183 = vmatpush1.msra.mxu0 0.0
    %184 = vmatprep.subr.mxu0 0.0
    %185 = vmatpush1.msra.mxu0 0.0
    %186 = vmatprep.subr.mxu0 0.0
    %187 = vmatpush1.msra.mxu0 0.0
    %188 = vmatprep.subr.mxu0 0.0
    %189 = vmatpush1.msra.mxu0 0.0
    %190 = vmatprep.subr.mxu0 0.0
    %191 = vmatpush1.msra.mxu0 0.0
    %192 = vmatprep.subr.mxu0 0.0
    %193 = vmatpush1.msra.mxu0 0.0
    %194 = vmatprep.subr.mxu0 0.0
    %195 = vmatpush1.msra.mxu0 0.0
    %196 = vmatprep.subr.mxu0 0.0
    %197 = vmatpush1.msra.mxu0 0.0
    %198 = vmatprep.subr.mxu0 0.0
    %199 = vmatpush1.msra.mxu0 0.0
    %200 = vmatprep.subr.mxu0 0.0
    %201 = vmatpush1.msra.mxu0 0.0
    %202 = vmatprep.subr.mxu0 0.0
    %203 = vmatpush1.msra.mxu0 0.0
    %204 = vmatprep.subr.mxu0 0.0
    %205 = vmatpush1.msra.mxu0 0.0
    %206 = vmatprep.subr.mxu0 0.0
    %207 = vmatpush1.msra.mxu0 0.0
    %208 = vmatprep.subr.mxu0 0.0
    %209 = vmatpush1.msra.mxu0 0.0
    %210 = vmatprep.mubr.f32.mxu0 0.0
    %211 = vmatmul.mubr.f32.gmra.mrb[0].mxu0 %v116
    %v212 = vpop.f32.mrb[0].mxu0
    %v213 = vadd.f32 %v99, %v212
    %v214 = vpop.f32.mrb[0].mxu0
    %v215 = vadd.f32 %v103, %v214
    %216 = vmatprep.mubr.f32.mxu0 0.0
    %217 = vmatmul.mubr.f32.gmra.mrb[0].mxu0 %v119
    %v218 = vpop.f32.mrb[0].mxu0
    %v219 = vadd.f32 %v99, %v218
    %v220 = vpop.f32.mrb[0].mxu0
    %v221 = vadd.f32 %v103, %v220
    %222 = vmatprep.mubr.f32.mxu0 0.0
    %223 = vmatmul.mubr.f32.gmra.mrb[0].mxu0 %v122
    %v224 = vpop.f32.mrb[0].mxu0
    %v225 = vadd.f32 %v99, %v224
    %v226 = vpop.f32.mrb[0].mxu0
    %v227 = vadd.f32 %v103, %v226
    %228 = vmatprep.mubr.f32.mxu0 0.0
    %229 = vmatmul.mubr.f32.gmra.mrb[0].mxu0 %v125
    %v230 = vpop.f32.mrb[0].mxu0
    %v231 = vadd.f32 %v99, %v230
    %v232 = vpop.f32.mrb[0].mxu0
    %v233 = vadd.f32 %v103, %v232
    %234 = vmatprep.mubr.f32.mxu0 0.0
    %235 = vmatmul.mubr.f32.gmra.mrb[0].mxu0 %v128
    %v236 = vpop.f32.mrb[0].mxu0
    %v237 = vadd.f32 %v99, %v236
    %v238 = vpop.f32.mrb[0].mxu0
    %v239 = vadd.f32 %v103, %v238
    %240 = vmatprep.mubr.f32.mxu0 0.0
    %241 = vmatmul.mubr.f32.gmra.mrb[0].mxu0 %v131
    %v242 = vpop.f32.mrb[0].mxu0
    %v243 = vadd.f32 %v99, %v242
    %v244 = vpop.f32.mrb[0].mxu0
    %v245 = vadd.f32 %v103, %v244
    %246 = vmatprep.mubr.f32.mxu0 0.0
    %247 = vmatmul.mubr.f32.gmra.mrb[0].mxu0 %v134
    %v248 = vpop.f32.mrb[0].mxu0
    %v249 = vadd.f32 %v99, %v248
    %v250 = vpop.f32.mrb[0].mxu0
    %v251 = vadd.f32 %v103, %v250
    %252 = vmatprep.mubr.f32.mxu0 0.0
    %253 = vmatmul.mubr.f32.gmra.mrb[0].mxu0 %v137
    %v254 = vpop.f32.mrb[0].mxu0
    %v255 = vadd.f32 %v99, %v254
    %v256 = vpop.f32.mrb[0].mxu0
    %v257 = vadd.f32 %v103, %v256
    %258 = vdwg.mxu0
    %259 = vmatprep.subr.mxu0 0.0
    %260 = vmatpush1.msra.mxu0 %v144
    %261 = vmatprep.subr.mxu0 0.0
    %262 = vmatpush1.msra.mxu0 0.0
    %263 = vmatprep.subr.mxu0 0.0
    %264 = vmatpush1.msra.mxu0 0.0
    %265 = vmatprep.subr.mxu0 0.0
    %266 = vmatpush1.msra.mxu0 0.0
    %267 = vmatprep.subr.mxu0 0.0
    %268 = vmatpush1.msra.mxu0 0.0
    %269 = vmatprep.subr.mxu0 0.0
    %270 = vmatpush1.msra.mxu0 0.0
    %271 = vmatprep.subr.mxu0 0.0
    %272 = vmatpush1.msra.mxu0 0.0
    %273 = vmatprep.subr.mxu0 0.0
    %274 = vmatpush1.msra.mxu0 0.0
    %275 = vmatprep.subr.mxu0 0.0
    %276 = vmatpush1.msra.mxu0 0.0
    %277 = vmatprep.subr.mxu0 0.0
    %278 = vmatpush1.msra.mxu0 0.0
    %279 = vmatprep.subr.mxu0 0.0
    %280 = vmatpush1.msra.mxu0 0.0
    %281 = vmatprep.subr.mxu0 0.0
    %282 = vmatpush1.msra.mxu0 0.0
    %283 = vmatprep.subr.mxu0 0.0
    %284 = vmatpush1.msra.mxu0 0.0
    %285 = vmatprep.subr.mxu0 0.0
    %286 = vmatpush1.msra.mxu0 0.0
    %287 = vmatprep.subr.mxu0 0.0
    %288 = vmatpush1.msra.mxu0 0.0
    %289 = vmatprep.subr.mxu0 0.0
    %290 = vmatpush1.msra.mxu0 0.0
    %291 = vmatprep.subr.mxu0 0.0
    %292 = vmatpush1.msra.mxu0 0.0
    %293 = vmatprep.subr.mxu0 0.0
    %294 = vmatpush1.msra.mxu0 0.0
    %295 = vmatprep.subr.mxu0 0.0
    %296 = vmatpush1.msra.mxu0 0.0
    %297 = vmatprep.subr.mxu0 0.0
    %298 = vmatpush1.msra.mxu0 0.0
    %299 = vmatprep.subr.mxu0 0.0
    %300 = vmatpush1.msra.mxu0 0.0
    %301 = vmatprep.subr.mxu0 0.0
    %302 = vmatpush1.msra.mxu0 0.0
    %303 = vmatprep.subr.mxu0 0.0
    %304 = vmatpush1.msra.mxu0 0.0
    %305 = vmatprep.subr.mxu0 0.0
    %306 = vmatpush1.msra.mxu0 0.0
    %307 = vmatprep.subr.mxu0 0.0
    %308 = vmatpush1.msra.mxu0 0.0
    %309 = vmatprep.subr.mxu0 0.0
    %310 = vmatpush1.msra.mxu0 0.0
    %311 = vmatprep.subr.mxu0 0.0
    %312 = vmatpush1.msra.mxu0 0.0
    %313 = vmatprep.subr.mxu0 0.0
    %314 = vmatpush1.msra.mxu0 0.0
    %315 = vmatprep.subr.mxu0 0.0
    %316 = vmatpush1.msra.mxu0 0.0
    %317 = vmatprep.subr.mxu0 0.0
    %318 = vmatpush1.msra.mxu0 0.0
    %319 = vmatprep.subr.mxu0 0.0
    %320 = vmatpush1.msra.mxu0 0.0
    %321 = vmatprep.subr.mxu0 0.0
    %322 = vmatpush1.msra.mxu0 0.0
    %323 = vmatprep.mubr.f32.mxu0 0.0
    %324 = vmatmul.mubr.f32.gmra.mrb[0].mxu0 %v116
    %v325 = vpop.f32.mrb[0].mxu0
    %v326 = vadd.f32 %v107, %v325
    %v327 = vpop.f32.mrb[0].mxu0
    %328 = vmatprep.mubr.f32.mxu0 0.0
    %329 = vmatmul.mubr.f32.gmra.mrb[0].mxu0 %v119
    %v330 = vpop.f32.mrb[0].mxu0
    %v331 = vadd.f32 %v107, %v330
    %v332 = vpop.f32.mrb[0].mxu0
    %333 = vmatprep.mubr.f32.mxu0 0.0
    %334 = vmatmul.mubr.f32.gmra.mrb[0].mxu0 %v122
    %v335 = vpop.f32.mrb[0].mxu0
    %v336 = vadd.f32 %v107, %v335
    %v337 = vpop.f32.mrb[0].mxu0
    %338 = vmatprep.mubr.f32.mxu0 0.0
    %339 = vmatmul.mubr.f32.gmra.mrb[0].mxu0 %v125
    %v340 = vpop.f32.mrb[0].mxu0
    %v341 = vadd.f32 %v107, %v340
    %v342 = vpop.f32.mrb[0].mxu0
    %343 = vmatprep.mubr.f32.mxu0 0.0
    %344 = vmatmul.mubr.f32.gmra.mrb[0].mxu0 %v128
    %v345 = vpop.f32.mrb[0].mxu0
    %v346 = vadd.f32 %v107, %v345
    %v347 = vpop.f32.mrb[0].mxu0
    %348 = vmatprep.mubr.f32.mxu0 0.0
    %349 = vmatmul.mubr.f32.gmra.mrb[0].mxu0 %v131
    %v350 = vpop.f32.mrb[0].mxu0
    %v351 = vadd.f32 %v107, %v350
    %v352 = vpop.f32.mrb[0].mxu0
    %353 = vmatprep.mubr.f32.mxu0 0.0
    %354 = vmatmul.mubr.f32.gmra.mrb[0].mxu0 %v134
    %v355 = vpop.f32.mrb[0].mxu0
    %v356 = vadd.f32 %v107, %v355
    %v357 = vpop.f32.mrb[0].mxu0
    %358 = vmatprep.mubr.f32.mxu0 0.0
    %359 = vmatmul.mubr.f32.gmra.mrb[0].mxu0 %v137
    %v360 = vpop.f32.mrb[0].mxu0
    %v361 = vadd.f32 %v107, %v360
    %v362 = vpop.f32.mrb[0].mxu0
    %363 = vdwg.mxu0
    %364 = vst [vmem:[#allocation3] sm:$0xff] %v213
    %365 = vst [vmem:[#allocation3 + $0x8] sm:$0xff] %v215
    %366 = vst [vmem:[#allocation3 + $0x10] sm:$0xff] %v326
    %367 = vst [vmem:[#allocation3 + $0x18] sm:$0xff] %v219
    %368 = vst [vmem:[#allocation3 + $0x20] sm:$0xff] %v221
    %369 = vst [vmem:[#allocation3 + $0x28] sm:$0xff] %v331
    %370 = vst [vmem:[#allocation3 + $0x30] sm:$0xff] %v225
    %371 = vst [vmem:[#allocation3 + $0x38] sm:$0xff] %v227
    %372 = vst [vmem:[#allocation3 + $0x40] sm:$0xff] %v336
    %373 = vst [vmem:[#allocation3 + $0x48] sm:$0xff] %v231
    %374 = vst [vmem:[#allocation3 + $0x50] sm:$0xff] %v233
    %375 = vst [vmem:[#allocation3 + $0x58] sm:$0xff] %v341
    %376 = vst [vmem:[#allocation3 + $0x60] sm:$0xff] %v237
    %377 = vst [vmem:[#allocation3 + $0x68] sm:$0xff] %v239
    %378 = vst [vmem:[#allocation3 + $0x70] sm:$0xff] %v346
    %379 = vst [vmem:[#allocation3 + $0x78] sm:$0xff] %v243
    %380 = vst [vmem:[#allocation3 + $0x80] sm:$0xff] %v245
    %381 = vst [vmem:[#allocation3 + $0x88] sm:$0xff] %v351
    %382 = vst [vmem:[#allocation3 + $0x90] sm:$0xff] %v249
    %383 = vst [vmem:[#allocation3 + $0x98] sm:$0xff] %v251
    %384 = vst [vmem:[#allocation3 + $0xa0] sm:$0xff] %v356
    %385 = vst [vmem:[#allocation3 + $0xa8] sm:$0xff] %v255
    %386 = vst [vmem:[#allocation3 + $0xb0] sm:$0xff] %v257
    %387 = vst [vmem:[#allocation3 + $0xb8] sm:$0xff] %v361
    %v388 = vld [vmem:[#allocation5] sm:$0xff]
    %v389 = vld [vmem:[#allocation5 + $0x8] sm:$0xff]
    %v390 = vld [vmem:[#allocation5 + $0x10] sm:$0xff]
    %v391 = vld [vmem:[#allocation5 + $0x18] sm:$0xff]
    %v392 = vld [vmem:[#allocation5 + $0x20] sm:$0xff]
    %v393 = vld [vmem:[#allocation5 + $0x28] sm:$0xff]
    %v394 = vld [vmem:[#allocation5 + $0x30] sm:$0xff]
    %v395 = vld [vmem:[#allocation5 + $0x38] sm:$0xff]
    %v396 = vld [vmem:[#allocation5 + $0x40] sm:$0xff]
    %v397 = vld [vmem:[#allocation5 + $0x48] sm:$0xff]
    %v398 = vld [vmem:[#allocation5 + $0x50] sm:$0xff]
    %v399 = vld [vmem:[#allocation5 + $0x58] sm:$0xff]
    %v400 = vld [vmem:[#allocation5 + $0x60] sm:$0xff]
    %v401 = vld [vmem:[#allocation5 + $0x68] sm:$0xff]
    %v402 = vld [vmem:[#allocation5 + $0x70] sm:$0xff]
    %v403 = vld [vmem:[#allocation5 + $0x78] sm:$0xff]
    %v404 = vld [vmem:[#allocation5 + $0x80] sm:$0xff]
    %v405 = vld [vmem:[#allocation5 + $0x88] sm:$0xff]
    %v406 = vld [vmem:[#allocation5 + $0x90] sm:$0xff]
    %v407 = vld [vmem:[#allocation5 + $0x98] sm:$0xff]
    %v408 = vld [vmem:[#allocation5 + $0xa0] sm:$0xff]
    %v409 = vld [vmem:[#allocation5 + $0xa8] sm:$0xff]
    %v410 = vld [vmem:[#allocation5 + $0xb0] sm:$0xff]
    %v411 = vld [vmem:[#allocation5 + $0xb8] sm:$0xff]
    %v412 = vld [vmem:[#allocation5 + $0xc0] sm:$0xff]
    %v413 = vld [vmem:[#allocation5 + $0xc8] sm:$0xff]
    %v414 = vld [vmem:[#allocation5 + $0xd0] sm:$0xff]
    %v415 = vld [vmem:[#allocation5 + $0xd8] sm:$0xff]
    %v416 = vld [vmem:[#allocation5 + $0xe0] sm:$0xff]
    %v417 = vld [vmem:[#allocation5 + $0xe8] sm:$0xff]
    %v418 = vld [vmem:[#allocation5 + $0xf0] sm:$0xff]
    %v419 = vld [vmem:[#allocation5 + $0xf8] sm:$0xff]
    %v420 = vld [vmem:[#allocation5 + $0x100] sm:$0xff]
    %v421 = vld [vmem:[#allocation5 + $0x108] sm:$0xff]
    %v422 = vld [vmem:[#allocation5 + $0x110] sm:$0xff]
    %v423 = vld [vmem:[#allocation5 + $0x118] sm:$0xff]
    %v424 = vld [vmem:[#allocation5 + $0x120] sm:$0xff]
    %v425 = vld [vmem:[#allocation5 + $0x128] sm:$0xff]
    %v426 = vld [vmem:[#allocation5 + $0x130] sm:$0xff]
    %v427 = vld [vmem:[#allocation5 + $0x138] sm:$0xff]
    %v428 = vld [vmem:[#allocation5 + $0x140] sm:$0xff]
    %v429 = vld [vmem:[#allocation5 + $0x148] sm:$0xff]
    %v430 = vld [vmem:[#allocation5 + $0x150] sm:$0xff]
    %v431 = vld [vmem:[#allocation5 + $0x158] sm:$0xff]
    %v432 = vld [vmem:[#allocation5 + $0x160] sm:$0xff]
    %v433 = vld [vmem:[#allocation5 + $0x168] sm:$0xff]
    %v434 = vld [vmem:[#allocation5 + $0x170] sm:$0xff]
    %v435 = vld [vmem:[#allocation5 + $0x178] sm:$0xff]
    %v436 = vld [vmem:[%s4] sm:$0x1]
    %v438 = vlaneseq
    %v439 = vshrl.u32 %v438, 7
    %v440 = vsub.s32 0, %v439
    %v441 = vrot.slane %v436, %v440
    %v443 = vld [vmem:[#allocation2] sm:$0xff]
    %s444 = smul.u32 0, 3
    %s445 = smul.addr %s444, 8
    %s446 = scalar_lea.vmem [#allocation3], %s445
    %v447 = vld [vmem:[%s446] sm:$0xff]
    %v448 = vld [vmem:[%s446 + $0x8] sm:$0xff]
    %v449 = vld [vmem:[%s446 + $0x10] sm:$0xff]
    %450 = vmatprep.subr.mxu0 %v389
    %451 = vmatpush1.msra.mxu0 %v388
    %452 = vmatprep.subr.mxu0 %v392
    %453 = vmatpush1.msra.mxu0 %v391
    %454 = vmatprep.subr.mxu0 %v395
    %455 = vmatpush1.msra.mxu0 %v394
    %456 = vmatprep.subr.mxu0 %v398
    %457 = vmatpush1.msra.mxu0 %v397
    %458 = vmatprep.subr.mxu0 %v401
    %459 = vmatpush1.msra.mxu0 %v400
    %460 = vmatprep.subr.mxu0 %v404
    %461 = vmatpush1.msra.mxu0 %v403
    %462 = vmatprep.subr.mxu0 %v407
    %463 = vmatpush1.msra.mxu0 %v406
    %464 = vmatprep.subr.mxu0 %v410
    %465 = vmatpush1.msra.mxu0 %v409
    %466 = vmatprep.subr.mxu0 %v413
    %467 = vmatpush1.msra.mxu0 %v412
    %468 = vmatprep.subr.mxu0 %v416
    %469 = vmatpush1.msra.mxu0 %v415
    %470 = vmatprep.subr.mxu0 %v419
    %471 = vmatpush1.msra.mxu0 %v418
    %472 = vmatprep.subr.mxu0 %v422
    %473 = vmatpush1.msra.mxu0 %v421
    %474 = vmatprep.subr.mxu0 %v425
    %475 = vmatpush1.msra.mxu0 %v424
    %476 = vmatprep.subr.mxu0 %v428
    %477 = vmatpush1.msra.mxu0 %v427
    %478 = vmatprep.subr.mxu0 %v431
    %479 = vmatpush1.msra.mxu0 %v430
    %480 = vmatprep.subr.mxu0 %v434
    %481 = vmatpush1.msra.mxu0 %v433
    %482 = vmatprep.subr.mxu0 0.0
    %483 = vmatpush1.msra.mxu0 0.0
    %484 = vmatprep.subr.mxu0 0.0
    %485 = vmatpush1.msra.mxu0 0.0
    %486 = vmatprep.subr.mxu0 0.0
    %487 = vmatpush1.msra.mxu0 0.0
    %488 = vmatprep.subr.mxu0 0.0
    %489 = vmatpush1.msra.mxu0 0.0
    %490 = vmatprep.subr.mxu0 0.0
    %491 = vmatpush1.msra.mxu0 0.0
    %492 = vmatprep.subr.mxu0 0.0
    %493 = vmatpush1.msra.mxu0 0.0
    %494 = vmatprep.subr.mxu0 0.0
    %495 = vmatpush1.msra.mxu0 0.0
    %496 = vmatprep.subr.mxu0 0.0
    %497 = vmatpush1.msra.mxu0 0.0
    %498 = vmatprep.subr.mxu0 0.0
    %499 = vmatpush1.msra.mxu0 0.0
    %500 = vmatprep.subr.mxu0 0.0
    %501 = vmatpush1.msra.mxu0 0.0
    %502 = vmatprep.subr.mxu0 0.0
    %503 = vmatpush1.msra.mxu0 0.0
    %504 = vmatprep.subr.mxu0 0.0
    %505 = vmatpush1.msra.mxu0 0.0
    %506 = vmatprep.subr.mxu0 0.0
    %507 = vmatpush1.msra.mxu0 0.0
    %508 = vmatprep.subr.mxu0 0.0
    %509 = vmatpush1.msra.mxu0 0.0
    %510 = vmatprep.subr.mxu0 0.0
    %511 = vmatpush1.msra.mxu0 0.0
    %512 = vmatprep.subr.mxu0 0.0
    %513 = vmatpush1.msra.mxu0 0.0
    %514 = vmatprep.mubr.f32.mxu0 0.0
    %515 = vmatmul.mubr.f32.gmra.mrb[0].mxu0 %v443
    %v516 = vpop.f32.mrb[0].mxu0
    %v517 = vadd.f32 0.0, %v516
    %v518 = vpop.f32.mrb[0].mxu0
    %v519 = vadd.f32 0.0, %v518
    %520 = vdwg.mxu0
    %521 = vmatprep.subr.mxu0 0.0
    %522 = vmatpush1.msra.mxu0 %v390
    %523 = vmatprep.subr.mxu0 0.0
    %524 = vmatpush1.msra.mxu0 %v393
    %525 = vmatprep.subr.mxu0 0.0
    %526 = vmatpush1.msra.mxu0 %v396
    %527 = vmatprep.subr.mxu0 0.0
    %528 = vmatpush1.msra.mxu0 %v399
    %529 = vmatprep.subr.mxu0 0.0
    %530 = vmatpush1.msra.mxu0 %v402
    %531 = vmatprep.subr.mxu0 0.0
    %532 = vmatpush1.msra.mxu0 %v405
    %533 = vmatprep.subr.mxu0 0.0
    %534 = vmatpush1.msra.mxu0 %v408
    %535 = vmatprep.subr.mxu0 0.0
    %536 = vmatpush1.msra.mxu0 %v411
    %537 = vmatprep.subr.mxu0 0.0
    %538 = vmatpush1.msra.mxu0 %v414
    %539 = vmatprep.subr.mxu0 0.0
    %540 = vmatpush1.msra.mxu0 %v417
    %541 = vmatprep.subr.mxu0 0.0
    %542 = vmatpush1.msra.mxu0 %v420
    %543 = vmatprep.subr.mxu0 0.0
    %544 = vmatpush1.msra.mxu0 %v423
    %545 = vmatprep.subr.mxu0 0.0
    %546 = vmatpush1.msra.mxu0 %v426
    %547 = vmatprep.subr.mxu0 0.0
    %548 = vmatpush1.msra.mxu0 %v429
    %549 = vmatprep.subr.mxu0 0.0
    %550 = vmatpush1.msra.mxu0 %v432
    %551 = vmatprep.subr.mxu0 0.0
    %552 = vmatpush1.msra.mxu0 %v435
    %553 = vmatprep.subr.mxu0 0.0
    %554 = vmatpush1.msra.mxu0 0.0
    %555 = vmatprep.subr.mxu0 0.0
    %556 = vmatpush1.msra.mxu0 0.0
    %557 = vmatprep.subr.mxu0 0.0
    %558 = vmatpush1.msra.mxu0 0.0
    %559 = vmatprep.subr.mxu0 0.0
    %560 = vmatpush1.msra.mxu0 0.0
    %561 = vmatprep.subr.mxu0 0.0
    %562 = vmatpush1.msra.mxu0 0.0
    %563 = vmatprep.subr.mxu0 0.0
    %564 = vmatpush1.msra.mxu0 0.0
    %565 = vmatprep.subr.mxu0 0.0
    %566 = vmatpush1.msra.mxu0 0.0
    %567 = vmatprep.subr.mxu0 0.0
    %568 = vmatpush1.msra.mxu0 0.0
    %569 = vmatprep.subr.mxu0 0.0
    %570 = vmatpush1.msra.mxu0 0.0
    %571 = vmatprep.subr.mxu0 0.0
    %572 = vmatpush1.msra.mxu0 0.0
    %573 = vmatprep.subr.mxu0 0.0
    %574 = vmatpush1.msra.mxu0 0.0
    %575 = vmatprep.subr.mxu0 0.0
    %576 = vmatpush1.msra.mxu0 0.0
    %577 = vmatprep.subr.mxu0 0.0
    %578 = vmatpush1.msra.mxu0 0.0
    %579 = vmatprep.subr.mxu0 0.0
    %580 = vmatpush1.msra.mxu0 0.0
    %581 = vmatprep.subr.mxu0 0.0
    %582 = vmatpush1.msra.mxu0 0.0
    %583 = vmatprep.subr.mxu0 0.0
    %584 = vmatpush1.msra.mxu0 0.0
    %585 = vmatprep.mubr.f32.mxu0 0.0
    %586 = vmatmul.mubr.f32.gmra.mrb[0].mxu0 %v443
    %v587 = vpop.f32.mrb[0].mxu0
    %v588 = vadd.f32 0.0, %v587
    %v589 = vpop.f32.mrb[0].mxu0
    %590 = vdwg.mxu0
    %v591 = vadd.f32 %v447, %v517
    %v592 = vxor.u32 %v591, 2147483648
    %v593 = vmul.f32 %v592, 1.442695
    %v594 = vpow.pop %v593
    %v595 = vadd.f32 %v594, 1.0
    %v596 = vrcp.pop %v595
    %v597 = vmul.f32 1.0, %v596
    %v598 = vadd.f32 %v448, %v519
    %v599 = vxor.u32 %v598, 2147483648
    %v600 = vmul.f32 %v599, 1.442695
    %v601 = vpow.pop %v600
    %v602 = vadd.f32 %v601, 1.0
    %v603 = vrcp.pop %v602
    %v604 = vmul.f32 1.0, %v603
    %v605 = vadd.f32 %v588, %v441
    %v606 = vmul.f32 %v597, %v605
    %v607 = vadd.f32 %v449, %v606
    %v608 = vtanh.pop %v607
    %v609 = vsub.f32 1.0, %v604
    %v610 = vmul.f32 %v609, %v608
    %v611 = vmul.f32 %v604, %v443
    %v612 = vadd.f32 %v610, %v611
    %613 = vst [vmem:[#allocation4] sm:$0xff] %v612
    %s614 = smul.u32 1, 3
    %s615 = smul.addr %s614, 8
    %s616 = scalar_lea.vmem [#allocation3], %s615
    %v617 = vld [vmem:[%s616] sm:$0xff]
    %v618 = vld [vmem:[%s616 + $0x8] sm:$0xff]
    %v619 = vld [vmem:[%s616 + $0x10] sm:$0xff]
    %620 = vmatprep.subr.mxu0 %v389
    %621 = vmatpush1.msra.mxu0 %v388
    %622 = vmatprep.subr.mxu0 %v392
    %623 = vmatpush1.msra.mxu0 %v391
    %624 = vmatprep.subr.mxu0 %v395
    %625 = vmatpush1.msra.mxu0 %v394
    %626 = vmatprep.subr.mxu0 %v398
    %627 = vmatpush1.msra.mxu0 %v397
    %628 = vmatprep.subr.mxu0 %v401
    %629 = vmatpush1.msra.mxu0 %v400
    %630 = vmatprep.subr.mxu0 %v404
    %631 = vmatpush1.msra.mxu0 %v403
    %632 = vmatprep.subr.mxu0 %v407
    %633 = vmatpush1.msra.mxu0 %v406
    %634 = vmatprep.subr.mxu0 %v410
    %635 = vmatpush1.msra.mxu0 %v409
    %636 = vmatprep.subr.mxu0 %v413
    %637 = vmatpush1.msra.mxu0 %v412
    %638 = vmatprep.subr.mxu0 %v416
    %639 = vmatpush1.msra.mxu0 %v415
    %640 = vmatprep.subr.mxu0 %v419
    %641 = vmatpush1.msra.mxu0 %v418
    %642 = vmatprep.subr.mxu0 %v422
    %643 = vmatpush1.msra.mxu0 %v421
    %644 = vmatprep.subr.mxu0 %v425
    %645 = vmatpush1.msra.mxu0 %v424
    %646 = vmatprep.subr.mxu0 %v428
    %647 = vmatpush1.msra.mxu0 %v427
    %648 = vmatprep.subr.mxu0 %v431
    %649 = vmatpush1.msra.mxu0 %v430
    %650 = vmatprep.subr.mxu0 %v434
    %651 = vmatpush1.msra.mxu0 %v433
    %652 = vmatprep.subr.mxu0 0.0
    %653 = vmatpush1.msra.mxu0 0.0
    %654 = vmatprep.subr.mxu0 0.0
    %655 = vmatpush1.msra.mxu0 0.0
    %656 = vmatprep.subr.mxu0 0.0
    %657 = vmatpush1.msra.mxu0 0.0
    %658 = vmatprep.subr.mxu0 0.0
    %659 = vmatpush1.msra.mxu0 0.0
    %660 = vmatprep.subr.mxu0 0.0
    %661 = vmatpush1.msra.mxu0 0.0
    %662 = vmatprep.subr.mxu0 0.0
    %663 = vmatpush1.msra.mxu0 0.0
    %664 = vmatprep.subr.mxu0 0.0
    %665 = vmatpush1.msra.mxu0 0.0
    %666 = vmatprep.subr.mxu0 0.0
    %667 = vmatpush1.msra.mxu0 0.0
    %668 = vmatprep.subr.mxu0 0.0
    %669 = vmatpush1.msra.mxu0 0.0
    %670 = vmatprep.subr.mxu0 0.0
    %671 = vmatpush1.msra.mxu0 0.0
    %672 = vmatprep.subr.mxu0 0.0
    %673 = vmatpush1.msra.mxu0 0.0
    %674 = vmatprep.subr.mxu0 0.0
    %675 = vmatpush1.msra.mxu0 0.0
    %676 = vmatprep.subr.mxu0 0.0
    %677 = vmatpush1.msra.mxu0 0.0
    %678 = vmatprep.subr.mxu0 0.0
    %679 = vmatpush1.msra.mxu0 0.0
    %680 = vmatprep.subr.mxu0 0.0
    %681 = vmatpush1.msra.mxu0 0.0
    %682 = vmatprep.subr.mxu0 0.0
    %683 = vmatpush1.msra.mxu0 0.0
    %684 = vmatprep.mubr.f32.mxu0 0.0
    %685 = vmatmul.mubr.f32.gmra.mrb[0].mxu0 %v612
    %v686 = vpop.f32.mrb[0].mxu0
    %v687 = vadd.f32 0.0, %v686
    %v688 = vpop.f32.mrb[0].mxu0
    %v689 = vadd.f32 0.0, %v688
    %690 = vdwg.mxu0
    %691 = vmatprep.subr.mxu0 0.0
    %692 = vmatpush1.msra.mxu0 %v390
    %693 = vmatprep.subr.mxu0 0.0
    %694 = vmatpush1.msra.mxu0 %v393
    %695 = vmatprep.subr.mxu0 0.0
    %696 = vmatpush1.msra.mxu0 %v396
    %697 = vmatprep.subr.mxu0 0.0
    %698 = vmatpush1.msra.mxu0 %v399
    %699 = vmatprep.subr.mxu0 0.0
    %700 = vmatpush1.msra.mxu0 %v402
    %701 = vmatprep.subr.mxu0 0.0
    %702 = vmatpush1.msra.mxu0 %v405
    %703 = vmatprep.subr.mxu0 0.0
    %704 = vmatpush1.msra.mxu0 %v408
    %705 = vmatprep.subr.mxu0 0.0
    %706 = vmatpush1.msra.mxu0 %v411
    %707 = vmatprep.subr.mxu0 0.0
    %708 = vmatpush1.msra.mxu0 %v414
    %709 = vmatprep.subr.mxu0 0.0
    %710 = vmatpush1.msra.mxu0 %v417
    %711 = vmatprep.subr.mxu0 0.0
    %712 = vmatpush1.msra.mxu0 %v420
    %713 = vmatprep.subr.mxu0 0.0
    %714 = vmatpush1.msra.mxu0 %v423
    %715 = vmatprep.subr.mxu0 0.0
    %716 = vmatpush1.msra.mxu0 %v426
    %717 = vmatprep.subr.mxu0 0.0
    %718 = vmatpush1.msra.mxu0 %v429
    %719 = vmatprep.subr.mxu0 0.0
    %720 = vmatpush1.msra.mxu0 %v432
    %721 = vmatprep.subr.mxu0 0.0
    %722 = vmatpush1.msra.mxu0 %v435
    %723 = vmatprep.subr.mxu0 0.0
    %724 = vmatpush1.msra.mxu0 0.0
    %725 = vmatprep.subr.mxu0 0.0
    %726 = vmatpush1.msra.mxu0 0.0
    %727 = vmatprep.subr.mxu0 0.0
    %728 = vmatpush1.msra.mxu0 0.0
    %729 = vmatprep.subr.mxu0 0.0
    %730 = vmatpush1.msra.mxu0 0.0
    %731 = vmatprep.subr.mxu0 0.0
    %732 = vmatpush1.msra.mxu0 0.0
    %733 = vmatprep.subr.mxu0 0.0
    %734 = vmatpush1.msra.mxu0 0.0
    %735 = vmatprep.subr.mxu0 0.0
    %736 = vmatpush1.msra.mxu0 0.0
    %737 = vmatprep.subr.mxu0 0.0
    %738 = vmatpush1.msra.mxu0 0.0
    %739 = vmatprep.subr.mxu0 0.0
    %740 = vmatpush1.msra.mxu0 0.0
    %741 = vmatprep.subr.mxu0 0.0
    %742 = vmatpush1.msra.mxu0 0.0
    %743 = vmatprep.subr.mxu0 0.0
    %744 = vmatpush1.msra.mxu0 0.0
    %745 = vmatprep.subr.mxu0 0.0
    %746 = vmatpush1.msra.mxu0 0.0
    %747 = vmatprep.subr.mxu0 0.0
    %748 = vmatpush1.msra.mxu0 0.0
    %749 = vmatprep.subr.mxu0 0.0
    %750 = vmatpush1.msra.mxu0 0.0
    %751 = vmatprep.subr.mxu0 0.0
    %752 = vmatpush1.msra.mxu0 0.0
    %753 = vmatprep.subr.mxu0 0.0
    %754 = vmatpush1.msra.mxu0 0.0
    %755 = vmatprep.mubr.f32.mxu0 0.0
    %756 = vmatmul.mubr.f32.gmra.mrb[0].mxu0 %v612
    %v757 = vpop.f32.mrb[0].mxu0
    %v758 = vadd.f32 0.0, %v757
    %v759 = vpop.f32.mrb[0].mxu0
    %760 = vdwg.mxu0
    %v761 = vadd.f32 %v617, %v687
    %v762 = vxor.u32 %v761, 2147483648
    %v763 = vmul.f32 %v762, 1.442695
    %v764 = vpow.pop %v763
    %v765 = vadd.f32 %v764, 1.0
    %v766 = vrcp.pop %v765
    %v767 = vmul.f32 1.0, %v766
    %v768 = vadd.f32 %v618, %v689
    %v769 = vxor.u32 %v768, 2147483648
    %v770 = vmul.f32 %v769, 1.442695
    %v771 = vpow.pop %v770
    %v772 = vadd.f32 %v771, 1.0
    %v773 = vrcp.pop %v772
    %v774 = vmul.f32 1.0, %v773
    %v775 = vadd.f32 %v758, %v441
    %v776 = vmul.f32 %v767, %v775
    %v777 = vadd.f32 %v619, %v776
    %v778 = vtanh.pop %v777
    %v779 = vsub.f32 1.0, %v774
    %v780 = vmul.f32 %v779, %v778
    %v781 = vmul.f32 %v774, %v612
    %v782 = vadd.f32 %v780, %v781
    %s783 = scalar_lea.vmem [#allocation4], 8
    %784 = vst [vmem:[%s783] sm:$0xff] %v782
    %s785 = smul.u32 2, 3
    %s786 = smul.addr %s785, 8
    %s787 = scalar_lea.vmem [#allocation3], %s786
    %v788 = vld [vmem:[%s787] sm:$0xff]
    %v789 = vld [vmem:[%s787 + $0x8] sm:$0xff]
    %v790 = vld [vmem:[%s787 + $0x10] sm:$0xff]
    %791 = vmatprep.subr.mxu0 %v389
    %792 = vmatpush1.msra.mxu0 %v388
    %793 = vmatprep.subr.mxu0 %v392
    %794 = vmatpush1.msra.mxu0 %v391
    %795 = vmatprep.subr.mxu0 %v395
    %796 = vmatpush1.msra.mxu0 %v394
    %797 = vmatprep.subr.mxu0 %v398
    %798 = vmatpush1.msra.mxu0 %v397
    %799 = vmatprep.subr.mxu0 %v401
    %800 = vmatpush1.msra.mxu0 %v400
    %801 = vmatprep.subr.mxu0 %v404
    %802 = vmatpush1.msra.mxu0 %v403
    %803 = vmatprep.subr.mxu0 %v407
    %804 = vmatpush1.msra.mxu0 %v406
    %805 = vmatprep.subr.mxu0 %v410
    %806 = vmatpush1.msra.mxu0 %v409
    %807 = vmatprep.subr.mxu0 %v413
    %808 = vmatpush1.msra.mxu0 %v412
    %809 = vmatprep.subr.mxu0 %v416
    %810 = vmatpush1.msra.mxu0 %v415
    %811 = vmatprep.subr.mxu0 %v419
    %812 = vmatpush1.msra.mxu0 %v418
    %813 = vmatprep.subr.mxu0 %v422
    %814 = vmatpush1.msra.mxu0 %v421
    %815 = vmatprep.subr.mxu0 %v425
    %816 = vmatpush1.msra.mxu0 %v424
    %817 = vmatprep.subr.mxu0 %v428
    %818 = vmatpush1.msra.mxu0 %v427
    %819 = vmatprep.subr.mxu0 %v431
    %820 = vmatpush1.msra.mxu0 %v430
    %821 = vmatprep.subr.mxu0 %v434
    %822 = vmatpush1.msra.mxu0 %v433
    %823 = vmatprep.subr.mxu0 0.0
    %824 = vmatpush1.msra.mxu0 0.0
    %825 = vmatprep.subr.mxu0 0.0
    %826 = vmatpush1.msra.mxu0 0.0
    %827 = vmatprep.subr.mxu0 0.0
    %828 = vmatpush1.msra.mxu0 0.0
    %829 = vmatprep.subr.mxu0 0.0
    %830 = vmatpush1.msra.mxu0 0.0
    %831 = vmatprep.subr.mxu0 0.0
    %832 = vmatpush1.msra.mxu0 0.0
    %833 = vmatprep.subr.mxu0 0.0
    %834 = vmatpush1.msra.mxu0 0.0
    %835 = vmatprep.subr.mxu0 0.0
    %836 = vmatpush1.msra.mxu0 0.0
    %837 = vmatprep.subr.mxu0 0.0
    %838 = vmatpush1.msra.mxu0 0.0
    %839 = vmatprep.subr.mxu0 0.0
    %840 = vmatpush1.msra.mxu0 0.0
    %841 = vmatprep.subr.mxu0 0.0
    %842 = vmatpush1.msra.mxu0 0.0
    %843 = vmatprep.subr.mxu0 0.0
    %844 = vmatpush1.msra.mxu0 0.0
    %845 = vmatprep.subr.mxu0 0.0
    %846 = vmatpush1.msra.mxu0 0.0
    %847 = vmatprep.subr.mxu0 0.0
    %848 = vmatpush1.msra.mxu0 0.0
    %849 = vmatprep.subr.mxu0 0.0
    %850 = vmatpush1.msra.mxu0 0.0
    %851 = vmatprep.subr.mxu0 0.0
    %852 = vmatpush1.msra.mxu0 0.0
    %853 = vmatprep.subr.mxu0 0.0
    %854 = vmatpush1.msra.mxu0 0.0
    %855 = vmatprep.mubr.f32.mxu0 0.0
    %856 = vmatmul.mubr.f32.gmra.mrb[0].mxu0 %v782
    %v857 = vpop.f32.mrb[0].mxu0
    %v858 = vadd.f32 0.0, %v857
    %v859 = vpop.f32.mrb[0].mxu0
    %v860 = vadd.f32 0.0, %v859
    %861 = vdwg.mxu0
    %862 = vmatprep.subr.mxu0 0.0
    %863 = vmatpush1.msra.mxu0 %v390
    %864 = vmatprep.subr.mxu0 0.0
    %865 = vmatpush1.msra.mxu0 %v393
    %866 = vmatprep.subr.mxu0 0.0
    %867 = vmatpush1.msra.mxu0 %v396
    %868 = vmatprep.subr.mxu0 0.0
    %869 = vmatpush1.msra.mxu0 %v399
    %870 = vmatprep.subr.mxu0 0.0
    %871 = vmatpush1.msra.mxu0 %v402
    %872 = vmatprep.subr.mxu0 0.0
    %873 = vmatpush1.msra.mxu0 %v405
    %874 = vmatprep.subr.mxu0 0.0
    %875 = vmatpush1.msra.mxu0 %v408
    %876 = vmatprep.subr.mxu0 0.0
    %877 = vmatpush1.msra.mxu0 %v411
    %878 = vmatprep.subr.mxu0 0.0
    %879 = vmatpush1.msra.mxu0 %v414
    %880 = vmatprep.subr.mxu0 0.0
    %881 = vmatpush1.msra.mxu0 %v417
    %882 = vmatprep.subr.mxu0 0.0
    %883 = vmatpush1.msra.mxu0 %v420
    %884 = vmatprep.subr.mxu0 0.0
    %885 = vmatpush1.msra.mxu0 %v423
    %886 = vmatprep.subr.mxu0 0.0
    %887 = vmatpush1.msra.mxu0 %v426
    %888 = vmatprep.subr.mxu0 0.0
    %889 = vmatpush1.msra.mxu0 %v429
    %890 = vmatprep.subr.mxu0 0.0
    %891 = vmatpush1.msra.mxu0 %v432
    %892 = vmatprep.subr.mxu0 0.0
    %893 = vmatpush1.msra.mxu0 %v435
    %894 = vmatprep.subr.mxu0 0.0
    %895 = vmatpush1.msra.mxu0 0.0
    %896 = vmatprep.subr.mxu0 0.0
    %897 = vmatpush1.msra.mxu0 0.0
    %898 = vmatprep.subr.mxu0 0.0
    %899 = vmatpush1.msra.mxu0 0.0
    %900 = vmatprep.subr.mxu0 0.0
    %901 = vmatpush1.msra.mxu0 0.0
    %902 = vmatprep.subr.mxu0 0.0
    %903 = vmatpush1.msra.mxu0 0.0
    %904 = vmatprep.subr.mxu0 0.0
    %905 = vmatpush1.msra.mxu0 0.0
    %906 = vmatprep.subr.mxu0 0.0
    %907 = vmatpush1.msra.mxu0 0.0
    %908 = vmatprep.subr.mxu0 0.0
    %909 = vmatpush1.msra.mxu0 0.0
    %910 = vmatprep.subr.mxu0 0.0
    %911 = vmatpush1.msra.mxu0 0.0
    %912 = vmatprep.subr.mxu0 0.0
    %913 = vmatpush1.msra.mxu0 0.0
    %914 = vmatprep.subr.mxu0 0.0
    %915 = vmatpush1.msra.mxu0 0.0
    %916 = vmatprep.subr.mxu0 0.0
    %917 = vmatpush1.msra.mxu0 0.0
    %918 = vmatprep.subr.mxu0 0.0
    %919 = vmatpush1.msra.mxu0 0.0
    %920 = vmatprep.subr.mxu0 0.0
    %921 = vmatpush1.msra.mxu0 0.0
    %922 = vmatprep.subr.mxu0 0.0
    %923 = vmatpush1.msra.mxu0 0.0
    %924 = vmatprep.subr.mxu0 0.0
    %925 = vmatpush1.msra.mxu0 0.0
    %926 = vmatprep.mubr.f32.mxu0 0.0
    %927 = vmatmul.mubr.f32.gmra.mrb[0].mxu0 %v782
    %v928 = vpop.f32.mrb[0].mxu0
    %v929 = vadd.f32 0.0, %v928
    %v930 = vpop.f32.mrb[0].mxu0
    %931 = vdwg.mxu0
    %v932 = vadd.f32 %v788, %v858
    %v933 = vxor.u32 %v932, 2147483648
    %v934 = vmul.f32 %v933, 1.442695
    %v935 = vpow.pop %v934
    %v936 = vadd.f32 %v935, 1.0
    %v937 = vrcp.pop %v936
    %v938 = vmul.f32 1.0, %v937
    %v939 = vadd.f32 %v789, %v860
    %v940 = vxor.u32 %v939, 2147483648
    %v941 = vmul.f32 %v940, 1.442695
    %v942 = vpow.pop %v941
    %v943 = vadd.f32 %v942, 1.0
    %v944 = vrcp.pop %v943
    %v945 = vmul.f32 1.0, %v944
    %v946 = vadd.f32 %v929, %v441
    %v947 = vmul.f32 %v938, %v946
    %v948 = vadd.f32 %v790, %v947
    %v949 = vtanh.pop %v948
    %v950 = vsub.f32 1.0, %v945
    %v951 = vmul.f32 %v950, %v949
    %v952 = vmul.f32 %v945, %v782
    %v953 = vadd.f32 %v951, %v952
    %s954 = scalar_lea.vmem [#allocation4], 16
    %955 = vst [vmem:[%s954] sm:$0xff] %v953
    %s956 = smul.u32 3, 3
    %s957 = smul.addr %s956, 8
    %s958 = scalar_lea.vmem [#allocation3], %s957
    %v959 = vld [vmem:[%s958] sm:$0xff]
    %v960 = vld [vmem:[%s958 + $0x8] sm:$0xff]
    %v961 = vld [vmem:[%s958 + $0x10] sm:$0xff]
    %962 = vmatprep.subr.mxu0 %v389
    %963 = vmatpush1.msra.mxu0 %v388
    %964 = vmatprep.subr.mxu0 %v392
    %965 = vmatpush1.msra.mxu0 %v391
    %966 = vmatprep.subr.mxu0 %v395
    %967 = vmatpush1.msra.mxu0 %v394
    %968 = vmatprep.subr.mxu0 %v398
    %969 = vmatpush1.msra.mxu0 %v397
    %970 = vmatprep.subr.mxu0 %v401
    %971 = vmatpush1.msra.mxu0 %v400
    %972 = vmatprep.subr.mxu0 %v404
    %973 = vmatpush1.msra.mxu0 %v403
    %974 = vmatprep.subr.mxu0 %v407
    %975 = vmatpush1.msra.mxu0 %v406
    %976 = vmatprep.subr.mxu0 %v410
    %977 = vmatpush1.msra.mxu0 %v409
    %978 = vmatprep.subr.mxu0 %v413
    %979 = vmatpush1.msra.mxu0 %v412
    %980 = vmatprep.subr.mxu0 %v416
    %981 = vmatpush1.msra.mxu0 %v415
    %982 = vmatprep.subr.mxu0 %v419
    %983 = vmatpush1.msra.mxu0 %v418
    %984 = vmatprep.subr.mxu0 %v422
    %985 = vmatpush1.msra.mxu0 %v421
    %986 = vmatprep.subr.mxu0 %v425
    %987 = vmatpush1.msra.mxu0 %v424
    %988 = vmatprep.subr.mxu0 %v428
    %989 = vmatpush1.msra.mxu0 %v427
    %990 = vmatprep.subr.mxu0 %v431
    %991 = vmatpush1.msra.mxu0 %v430
    %992 = vmatprep.subr.mxu0 %v434
    %993 = vmatpush1.msra.mxu0 %v433
    %994 = vmatprep.subr.mxu0 0.0
    %995 = vmatpush1.msra.mxu0 0.0
    %996 = vmatprep.subr.mxu0 0.0
    %997 = vmatpush1.msra.mxu0 0.0
    %998 = vmatprep.subr.mxu0 0.0
    %999 = vmatpush1.msra.mxu0 0.0
    %1000 = vmatprep.subr.mxu0 0.0
    %1001 = vmatpush1.msra.mxu0 0.0
    %1002 = vmatprep.subr.mxu0 0.0
    %1003 = vmatpush1.msra.mxu0 0.0
    %1004 = vmatprep.subr.mxu0 0.0
    %1005 = vmatpush1.msra.mxu0 0.0
    %1006 = vmatprep.subr.mxu0 0.0
    %1007 = vmatpush1.msra.mxu0 0.0
    %1008 = vmatprep.subr.mxu0 0.0
    %1009 = vmatpush1.msra.mxu0 0.0
    %1010 = vmatprep.subr.mxu0 0.0
    %1011 = vmatpush1.msra.mxu0 0.0
    %1012 = vmatprep.subr.mxu0 0.0
    %1013 = vmatpush1.msra.mxu0 0.0
    %1014 = vmatprep.subr.mxu0 0.0
    %1015 = vmatpush1.msra.mxu0 0.0
    %1016 = vmatprep.subr.mxu0 0.0
    %1017 = vmatpush1.msra.mxu0 0.0
    %1018 = vmatprep.subr.mxu0 0.0
    %1019 = vmatpush1.msra.mxu0 0.0
    %1020 = vmatprep.subr.mxu0 0.0
    %1021 = vmatpush1.msra.mxu0 0.0
    %1022 = vmatprep.subr.mxu0 0.0
    %1023 = vmatpush1.msra.mxu0 0.0
    %1024 = vmatprep.subr.mxu0 0.0
    %1025 = vmatpush1.msra.mxu0 0.0
    %1026 = vmatprep.mubr.f32.mxu0 0.0
    %1027 = vmatmul.mubr.f32.gmra.mrb[0].mxu0 %v953
    %v1028 = vpop.f32.mrb[0].mxu0
    %v1029 = vadd.f32 0.0, %v1028
    %v1030 = vpop.f32.mrb[0].mxu0
    %v1031 = vadd.f32 0.0, %v1030
    %1032 = vdwg.mxu0
    %1033 = vmatprep.subr.mxu0 0.0
    %1034 = vmatpush1.msra.mxu0 %v390
    %1035 = vmatprep.subr.mxu0 0.0
    %1036 = vmatpush1.msra.mxu0 %v393
    %1037 = vmatprep.subr.mxu0 0.0
    %1038 = vmatpush1.msra.mxu0 %v396
    %1039 = vmatprep.subr.mxu0 0.0
    %1040 = vmatpush1.msra.mxu0 %v399
    %1041 = vmatprep.subr.mxu0 0.0
    %1042 = vmatpush1.msra.mxu0 %v402
    %1043 = vmatprep.subr.mxu0 0.0
    %1044 = vmatpush1.msra.mxu0 %v405
    %1045 = vmatprep.subr.mxu0 0.0
    %1046 = vmatpush1.msra.mxu0 %v408
    %1047 = vmatprep.subr.mxu0 0.0
    %1048 = vmatpush1.msra.mxu0 %v411
    %1049 = vmatprep.subr.mxu0 0.0
    %1050 = vmatpush1.msra.mxu0 %v414
    %1051 = vmatprep.subr.mxu0 0.0
    %1052 = vmatpush1.msra.mxu0 %v417
    %1053 = vmatprep.subr.mxu0 0.0
    %1054 = vmatpush1.msra.mxu0 %v420
    %1055 = vmatprep.subr.mxu0 0.0
    %1056 = vmatpush1.msra.mxu0 %v423
    %1057 = vmatprep.subr.mxu0 0.0
    %1058 = vmatpush1.msra.mxu0 %v426
    %1059 = vmatprep.subr.mxu0 0.0
    %1060 = vmatpush1.msra.mxu0 %v429
    %1061 = vmatprep.subr.mxu0 0.0
    %1062 = vmatpush1.msra.mxu0 %v432
    %1063 = vmatprep.subr.mxu0 0.0
    %1064 = vmatpush1.msra.mxu0 %v435
    %1065 = vmatprep.subr.mxu0 0.0
    %1066 = vmatpush1.msra.mxu0 0.0
    %1067 = vmatprep.subr.mxu0 0.0
    %1068 = vmatpush1.msra.mxu0 0.0
    %1069 = vmatprep.subr.mxu0 0.0
    %1070 = vmatpush1.msra.mxu0 0.0
    %1071 = vmatprep.subr.mxu0 0.0
    %1072 = vmatpush1.msra.mxu0 0.0
    %1073 = vmatprep.subr.mxu0 0.0
    %1074 = vmatpush1.msra.mxu0 0.0
    %1075 = vmatprep.subr.mxu0 0.0
    %1076 = vmatpush1.msra.mxu0 0.0
    %1077 = vmatprep.subr.mxu0 0.0
    %1078 = vmatpush1.msra.mxu0 0.0
    %1079 = vmatprep.subr.mxu0 0.0
    %1080 = vmatpush1.msra.mxu0 0.0
    %1081 = vmatprep.subr.mxu0 0.0
    %1082 = vmatpush1.msra.mxu0 0.0
    %1083 = vmatprep.subr.mxu0 0.0
    %1084 = vmatpush1.msra.mxu0 0.0
    %1085 = vmatprep.subr.mxu0 0.0
    %1086 = vmatpush1.msra.mxu0 0.0
    %1087 = vmatprep.subr.mxu0 0.0
    %1088 = vmatpush1.msra.mxu0 0.0
    %1089 = vmatprep.subr.mxu0 0.0
    %1090 = vmatpush1.msra.mxu0 0.0
    %1091 = vmatprep.subr.mxu0 0.0
    %1092 = vmatpush1.msra.mxu0 0.0
    %1093 = vmatprep.subr.mxu0 0.0
    %1094 = vmatpush1.msra.mxu0 0.0
    %1095 = vmatprep.subr.mxu0 0.0
    %1096 = vmatpush1.msra.mxu0 0.0
    %1097 = vmatprep.mubr.f32.mxu0 0.0
    %1098 = vmatmul.mubr.f32.gmra.mrb[0].mxu0 %v953
    %v1099 = vpop.f32.mrb[0].mxu0
    %v1100 = vadd.f32 0.0, %v1099
    %v1101 = vpop.f32.mrb[0].mxu0
    %1102 = vdwg.mxu0
    %v1103 = vadd.f32 %v959, %v1029
    %v1104 = vxor.u32 %v1103, 2147483648
    %v1105 = vmul.f32 %v1104, 1.442695
    %v1106 = vpow.pop %v1105
    %v1107 = vadd.f32 %v1106, 1.0
    %v1108 = vrcp.pop %v1107
    %v1109 = vmul.f32 1.0, %v1108
    %v1110 = vadd.f32 %v960, %v1031
    %v1111 = vxor.u32 %v1110, 2147483648
    %v1112 = vmul.f32 %v1111, 1.442695
    %v1113 = vpow.pop %v1112
    %v1114 = vadd.f32 %v1113, 1.0
    %v1115 = vrcp.pop %v1114
    %v1116 = vmul.f32 1.0, %v1115
    %v1117 = vadd.f32 %v1100, %v441
    %v1118 = vmul.f32 %v1109, %v1117
    %v1119 = vadd.f32 %v961, %v1118
    %v1120 = vtanh.pop %v1119
    %v1121 = vsub.f32 1.0, %v1116
    %v1122 = vmul.f32 %v1121, %v1120
    %v1123 = vmul.f32 %v1116, %v953
    %v1124 = vadd.f32 %v1122, %v1123
    %s1125 = scalar_lea.vmem [#allocation4], 24
    %1126 = vst [vmem:[%s1125] sm:$0xff] %v1124
    %s1127 = smul.u32 4, 3
    %s1128 = smul.addr %s1127, 8
    %s1129 = scalar_lea.vmem [#allocation3], %s1128
    %v1130 = vld [vmem:[%s1129] sm:$0xff]
    %v1131 = vld [vmem:[%s1129 + $0x8] sm:$0xff]
    %v1132 = vld [vmem:[%s1129 + $0x10] sm:$0xff]
    %1133 = vmatprep.subr.mxu0 %v389
    %1134 = vmatpush1.msra.mxu0 %v388
    %1135 = vmatprep.subr.mxu0 %v392
    %1136 = vmatpush1.msra.mxu0 %v391
    %1137 = vmatprep.subr.mxu0 %v395
    %1138 = vmatpush1.msra.mxu0 %v394
    %1139 = vmatprep.subr.mxu0 %v398
    %1140 = vmatpush1.msra.mxu0 %v397
    %1141 = vmatprep.subr.mxu0 %v401
    %1142 = vmatpush1.msra.mxu0 %v400
    %1143 = vmatprep.subr.mxu0 %v404
    %1144 = vmatpush1.msra.mxu0 %v403
    %1145 = vmatprep.subr.mxu0 %v407
    %1146 = vmatpush1.msra.mxu0 %v406
    %1147 = vmatprep.subr.mxu0 %v410
    %1148 = vmatpush1.msra.mxu0 %v409
    %1149 = vmatprep.subr.mxu0 %v413
    %1150 = vmatpush1.msra.mxu0 %v412
    %1151 = vmatprep.subr.mxu0 %v416
    %1152 = vmatpush1.msra.mxu0 %v415
    %1153 = vmatprep.subr.mxu0 %v419
    %1154 = vmatpush1.msra.mxu0 %v418
    %1155 = vmatprep.subr.mxu0 %v422
    %1156 = vmatpush1.msra.mxu0 %v421
    %1157 = vmatprep.subr.mxu0 %v425
    %1158 = vmatpush1.msra.mxu0 %v424
    %1159 = vmatprep.subr.mxu0 %v428
    %1160 = vmatpush1.msra.mxu0 %v427
    %1161 = vmatprep.subr.mxu0 %v431
    %1162 = vmatpush1.msra.mxu0 %v430
    %1163 = vmatprep.subr.mxu0 %v434
    %1164 = vmatpush1.msra.mxu0 %v433
    %1165 = vmatprep.subr.mxu0 0.0
    %1166 = vmatpush1.msra.mxu0 0.0
    %1167 = vmatprep.subr.mxu0 0.0
    %1168 = vmatpush1.msra.mxu0 0.0
    %1169 = vmatprep.subr.mxu0 0.0
    %1170 = vmatpush1.msra.mxu0 0.0
    %1171 = vmatprep.subr.mxu0 0.0
    %1172 = vmatpush1.msra.mxu0 0.0
    %1173 = vmatprep.subr.mxu0 0.0
    %1174 = vmatpush1.msra.mxu0 0.0
    %1175 = vmatprep.subr.mxu0 0.0
    %1176 = vmatpush1.msra.mxu0 0.0
    %1177 = vmatprep.subr.mxu0 0.0
    %1178 = vmatpush1.msra.mxu0 0.0
    %1179 = vmatprep.subr.mxu0 0.0
    %1180 = vmatpush1.msra.mxu0 0.0
    %1181 = vmatprep.subr.mxu0 0.0
    %1182 = vmatpush1.msra.mxu0 0.0
    %1183 = vmatprep.subr.mxu0 0.0
    %1184 = vmatpush1.msra.mxu0 0.0
    %1185 = vmatprep.subr.mxu0 0.0
    %1186 = vmatpush1.msra.mxu0 0.0
    %1187 = vmatprep.subr.mxu0 0.0
    %1188 = vmatpush1.msra.mxu0 0.0
    %1189 = vmatprep.subr.mxu0 0.0
    %1190 = vmatpush1.msra.mxu0 0.0
    %1191 = vmatprep.subr.mxu0 0.0
    %1192 = vmatpush1.msra.mxu0 0.0
    %1193 = vmatprep.subr.mxu0 0.0
    %1194 = vmatpush1.msra.mxu0 0.0
    %1195 = vmatprep.subr.mxu0 0.0
    %1196 = vmatpush1.msra.mxu0 0.0
    %1197 = vmatprep.mubr.f32.mxu0 0.0
    %1198 = vmatmul.mubr.f32.gmra.mrb[0].mxu0 %v1124
    %v1199 = vpop.f32.mrb[0].mxu0
    %v1200 = vadd.f32 0.0, %v1199
    %v1201 = vpop.f32.mrb[0].mxu0
    %v1202 = vadd.f32 0.0, %v1201
    %1203 = vdwg.mxu0
    %1204 = vmatprep.subr.mxu0 0.0
    %1205 = vmatpush1.msra.mxu0 %v390
    %1206 = vmatprep.subr.mxu0 0.0
    %1207 = vmatpush1.msra.mxu0 %v393
    %1208 = vmatprep.subr.mxu0 0.0
    %1209 = vmatpush1.msra.mxu0 %v396
    %1210 = vmatprep.subr.mxu0 0.0
    %1211 = vmatpush1.msra.mxu0 %v399
    %1212 = vmatprep.subr.mxu0 0.0
    %1213 = vmatpush1.msra.mxu0 %v402
    %1214 = vmatprep.subr.mxu0 0.0
    %1215 = vmatpush1.msra.mxu0 %v405
    %1216 = vmatprep.subr.mxu0 0.0
    %1217 = vmatpush1.msra.mxu0 %v408
    %1218 = vmatprep.subr.mxu0 0.0
    %1219 = vmatpush1.msra.mxu0 %v411
    %1220 = vmatprep.subr.mxu0 0.0
    %1221 = vmatpush1.msra.mxu0 %v414
    %1222 = vmatprep.subr.mxu0 0.0
    %1223 = vmatpush1.msra.mxu0 %v417
    %1224 = vmatprep.subr.mxu0 0.0
    %1225 = vmatpush1.msra.mxu0 %v420
    %1226 = vmatprep.subr.mxu0 0.0
    %1227 = vmatpush1.msra.mxu0 %v423
    %1228 = vmatprep.subr.mxu0 0.0
    %1229 = vmatpush1.msra.mxu0 %v426
    %1230 = vmatprep.subr.mxu0 0.0
    %1231 = vmatpush1.msra.mxu0 %v429
    %1232 = vmatprep.subr.mxu0 0.0
    %1233 = vmatpush1.msra.mxu0 %v432
    %1234 = vmatprep.subr.mxu0 0.0
    %1235 = vmatpush1.msra.mxu0 %v435
    %1236 = vmatprep.subr.mxu0 0.0
    %1237 = vmatpush1.msra.mxu0 0.0
    %1238 = vmatprep.subr.mxu0 0.0
    %1239 = vmatpush1.msra.mxu0 0.0
    %1240 = vmatprep.subr.mxu0 0.0
    %1241 = vmatpush1.msra.mxu0 0.0
    %1242 = vmatprep.subr.mxu0 0.0
    %1243 = vmatpush1.msra.mxu0 0.0
    %1244 = vmatprep.subr.mxu0 0.0
    %1245 = vmatpush1.msra.mxu0 0.0
    %1246 = vmatprep.subr.mxu0 0.0
    %1247 = vmatpush1.msra.mxu0 0.0
    %1248 = vmatprep.subr.mxu0 0.0
    %1249 = vmatpush1.msra.mxu0 0.0
    %1250 = vmatprep.subr.mxu0 0.0
    %1251 = vmatpush1.msra.mxu0 0.0
    %1252 = vmatprep.subr.mxu0 0.0
    %1253 = vmatpush1.msra.mxu0 0.0
    %1254 = vmatprep.subr.mxu0 0.0
    %1255 = vmatpush1.msra.mxu0 0.0
    %1256 = vmatprep.subr.mxu0 0.0
    %1257 = vmatpush1.msra.mxu0 0.0
    %1258 = vmatprep.subr.mxu0 0.0
    %1259 = vmatpush1.msra.mxu0 0.0
    %1260 = vmatprep.subr.mxu0 0.0
    %1261 = vmatpush1.msra.mxu0 0.0
    %1262 = vmatprep.subr.mxu0 0.0
    %1263 = vmatpush1.msra.mxu0 0.0
    %1264 = vmatprep.subr.mxu0 0.0
    %1265 = vmatpush1.msra.mxu0 0.0
    %1266 = vmatprep.subr.mxu0 0.0
    %1267 = vmatpush1.msra.mxu0 0.0
    %1268 = vmatprep.mubr.f32.mxu0 0.0
    %1269 = vmatmul.mubr.f32.gmra.mrb[0].mxu0 %v1124
    %v1270 = vpop.f32.mrb[0].mxu0
    %v1271 = vadd.f32 0.0, %v1270
    %v1272 = vpop.f32.mrb[0].mxu0
    %1273 = vdwg.mxu0
    %v1274 = vadd.f32 %v1130, %v1200
    %v1275 = vxor.u32 %v1274, 2147483648
    %v1276 = vmul.f32 %v1275, 1.442695
    %v1277 = vpow.pop %v1276
    %v1278 = vadd.f32 %v1277, 1.0
    %v1279 = vrcp.pop %v1278
    %v1280 = vmul.f32 1.0, %v1279
    %v1281 = vadd.f32 %v1131, %v1202
    %v1282 = vxor.u32 %v1281, 2147483648
    %v1283 = vmul.f32 %v1282, 1.442695
    %v1284 = vpow.pop %v1283
    %v1285 = vadd.f32 %v1284, 1.0
    %v1286 = vrcp.pop %v1285
    %v1287 = vmul.f32 1.0, %v1286
    %v1288 = vadd.f32 %v1271, %v441
    %v1289 = vmul.f32 %v1280, %v1288
    %v1290 = vadd.f32 %v1132, %v1289
    %v1291 = vtanh.pop %v1290
    %v1292 = vsub.f32 1.0, %v1287
    %v1293 = vmul.f32 %v1292, %v1291
    %v1294 = vmul.f32 %v1287, %v1124
    %v1295 = vadd.f32 %v1293, %v1294
    %s1296 = scalar_lea.vmem [#allocation4], 32
    %1297 = vst [vmem:[%s1296] sm:$0xff] %v1295
    %s1298 = smul.u32 5, 3
    %s1299 = smul.addr %s1298, 8
    %s1300 = scalar_lea.vmem [#allocation3], %s1299
    %v1301 = vld [vmem:[%s1300] sm:$0xff]
    %v1302 = vld [vmem:[%s1300 + $0x8] sm:$0xff]
    %v1303 = vld [vmem:[%s1300 + $0x10] sm:$0xff]
    %1304 = vmatprep.subr.mxu0 %v389
    %1305 = vmatpush1.msra.mxu0 %v388
    %1306 = vmatprep.subr.mxu0 %v392
    %1307 = vmatpush1.msra.mxu0 %v391
    %1308 = vmatprep.subr.mxu0 %v395
    %1309 = vmatpush1.msra.mxu0 %v394
    %1310 = vmatprep.subr.mxu0 %v398
    %1311 = vmatpush1.msra.mxu0 %v397
    %1312 = vmatprep.subr.mxu0 %v401
    %1313 = vmatpush1.msra.mxu0 %v400
    %1314 = vmatprep.subr.mxu0 %v404
    %1315 = vmatpush1.msra.mxu0 %v403
    %1316 = vmatprep.subr.mxu0 %v407
    %1317 = vmatpush1.msra.mxu0 %v406
    %1318 = vmatprep.subr.mxu0 %v410
    %1319 = vmatpush1.msra.mxu0 %v409
    %1320 = vmatprep.subr.mxu0 %v413
    %1321 = vmatpush1.msra.mxu0 %v412
    %1322 = vmatprep.subr.mxu0 %v416
    %1323 = vmatpush1.msra.mxu0 %v415
    %1324 = vmatprep.subr.mxu0 %v419
    %1325 = vmatpush1.msra.mxu0 %v418
    %1326 = vmatprep.subr.mxu0 %v422
    %1327 = vmatpush1.msra.mxu0 %v421
    %1328 = vmatprep.subr.mxu0 %v425
    %1329 = vmatpush1.msra.mxu0 %v424
    %1330 = vmatprep.subr.mxu0 %v428
    %1331 = vmatpush1.msra.mxu0 %v427
    %1332 = vmatprep.subr.mxu0 %v431
    %1333 = vmatpush1.msra.mxu0 %v430
    %1334 = vmatprep.subr.mxu0 %v434
    %1335 = vmatpush1.msra.mxu0 %v433
    %1336 = vmatprep.subr.mxu0 0.0
    %1337 = vmatpush1.msra.mxu0 0.0
    %1338 = vmatprep.subr.mxu0 0.0
    %1339 = vmatpush1.msra.mxu0 0.0
    %1340 = vmatprep.subr.mxu0 0.0
    %1341 = vmatpush1.msra.mxu0 0.0
    %1342 = vmatprep.subr.mxu0 0.0
    %1343 = vmatpush1.msra.mxu0 0.0
    %1344 = vmatprep.subr.mxu0 0.0
    %1345 = vmatpush1.msra.mxu0 0.0
    %1346 = vmatprep.subr.mxu0 0.0
    %1347 = vmatpush1.msra.mxu0 0.0
    %1348 = vmatprep.subr.mxu0 0.0
    %1349 = vmatpush1.msra.mxu0 0.0
    %1350 = vmatprep.subr.mxu0 0.0
    %1351 = vmatpush1.msra.mxu0 0.0
    %1352 = vmatprep.subr.mxu0 0.0
    %1353 = vmatpush1.msra.mxu0 0.0
    %1354 = vmatprep.subr.mxu0 0.0
    %1355 = vmatpush1.msra.mxu0 0.0
    %1356 = vmatprep.subr.mxu0 0.0
    %1357 = vmatpush1.msra.mxu0 0.0
    %1358 = vmatprep.subr.mxu0 0.0
    %1359 = vmatpush1.msra.mxu0 0.0
    %1360 = vmatprep.subr.mxu0 0.0
    %1361 = vmatpush1.msra.mxu0 0.0
    %1362 = vmatprep.subr.mxu0 0.0
    %1363 = vmatpush1.msra.mxu0 0.0
    %1364 = vmatprep.subr.mxu0 0.0
    %1365 = vmatpush1.msra.mxu0 0.0
    %1366 = vmatprep.subr.mxu0 0.0
    %1367 = vmatpush1.msra.mxu0 0.0
    %1368 = vmatprep.mubr.f32.mxu0 0.0
    %1369 = vmatmul.mubr.f32.gmra.mrb[0].mxu0 %v1295
    %v1370 = vpop.f32.mrb[0].mxu0
    %v1371 = vadd.f32 0.0, %v1370
    %v1372 = vpop.f32.mrb[0].mxu0
    %v1373 = vadd.f32 0.0, %v1372
    %1374 = vdwg.mxu0
    %1375 = vmatprep.subr.mxu0 0.0
    %1376 = vmatpush1.msra.mxu0 %v390
    %1377 = vmatprep.subr.mxu0 0.0
    %1378 = vmatpush1.msra.mxu0 %v393
    %1379 = vmatprep.subr.mxu0 0.0
    %1380 = vmatpush1.msra.mxu0 %v396
    %1381 = vmatprep.subr.mxu0 0.0
    %1382 = vmatpush1.msra.mxu0 %v399
    %1383 = vmatprep.subr.mxu0 0.0
    %1384 = vmatpush1.msra.mxu0 %v402
    %1385 = vmatprep.subr.mxu0 0.0
    %1386 = vmatpush1.msra.mxu0 %v405
    %1387 = vmatprep.subr.mxu0 0.0
    %1388 = vmatpush1.msra.mxu0 %v408
    %1389 = vmatprep.subr.mxu0 0.0
    %1390 = vmatpush1.msra.mxu0 %v411
    %1391 = vmatprep.subr.mxu0 0.0
    %1392 = vmatpush1.msra.mxu0 %v414
    %1393 = vmatprep.subr.mxu0 0.0
    %1394 = vmatpush1.msra.mxu0 %v417
    %1395 = vmatprep.subr.mxu0 0.0
    %1396 = vmatpush1.msra.mxu0 %v420
    %1397 = vmatprep.subr.mxu0 0.0
    %1398 = vmatpush1.msra.mxu0 %v423
    %1399 = vmatprep.subr.mxu0 0.0
    %1400 = vmatpush1.msra.mxu0 %v426
    %1401 = vmatprep.subr.mxu0 0.0
    %1402 = vmatpush1.msra.mxu0 %v429
    %1403 = vmatprep.subr.mxu0 0.0
    %1404 = vmatpush1.msra.mxu0 %v432
    %1405 = vmatprep.subr.mxu0 0.0
    %1406 = vmatpush1.msra.mxu0 %v435
    %1407 = vmatprep.subr.mxu0 0.0
    %1408 = vmatpush1.msra.mxu0 0.0
    %1409 = vmatprep.subr.mxu0 0.0
    %1410 = vmatpush1.msra.mxu0 0.0
    %1411 = vmatprep.subr.mxu0 0.0
    %1412 = vmatpush1.msra.mxu0 0.0
    %1413 = vmatprep.subr.mxu0 0.0
    %1414 = vmatpush1.msra.mxu0 0.0
    %1415 = vmatprep.subr.mxu0 0.0
    %1416 = vmatpush1.msra.mxu0 0.0
    %1417 = vmatprep.subr.mxu0 0.0
    %1418 = vmatpush1.msra.mxu0 0.0
    %1419 = vmatprep.subr.mxu0 0.0
    %1420 = vmatpush1.msra.mxu0 0.0
    %1421 = vmatprep.subr.mxu0 0.0
    %1422 = vmatpush1.msra.mxu0 0.0
    %1423 = vmatprep.subr.mxu0 0.0
    %1424 = vmatpush1.msra.mxu0 0.0
    %1425 = vmatprep.subr.mxu0 0.0
    %1426 = vmatpush1.msra.mxu0 0.0
    %1427 = vmatprep.subr.mxu0 0.0
    %1428 = vmatpush1.msra.mxu0 0.0
    %1429 = vmatprep.subr.mxu0 0.0
    %1430 = vmatpush1.msra.mxu0 0.0
    %1431 = vmatprep.subr.mxu0 0.0
    %1432 = vmatpush1.msra.mxu0 0.0
    %1433 = vmatprep.subr.mxu0 0.0
    %1434 = vmatpush1.msra.mxu0 0.0
    %1435 = vmatprep.subr.mxu0 0.0
    %1436 = vmatpush1.msra.mxu0 0.0
    %1437 = vmatprep.subr.mxu0 0.0
    %1438 = vmatpush1.msra.mxu0 0.0
    %1439 = vmatprep.mubr.f32.mxu0 0.0
    %1440 = vmatmul.mubr.f32.gmra.mrb[0].mxu0 %v1295
    %v1441 = vpop.f32.mrb[0].mxu0
    %v1442 = vadd.f32 0.0, %v1441
    %v1443 = vpop.f32.mrb[0].mxu0
    %1444 = vdwg.mxu0
    %v1445 = vadd.f32 %v1301, %v1371
    %v1446 = vxor.u32 %v1445, 2147483648
    %v1447 = vmul.f32 %v1446, 1.442695
    %v1448 = vpow.pop %v1447
    %v1449 = vadd.f32 %v1448, 1.0
    %v1450 = vrcp.pop %v1449
    %v1451 = vmul.f32 1.0, %v1450
    %v1452 = vadd.f32 %v1302, %v1373
    %v1453 = vxor.u32 %v1452, 2147483648
    %v1454 = vmul.f32 %v1453, 1.442695
    %v1455 = vpow.pop %v1454
    %v1456 = vadd.f32 %v1455, 1.0
    %v1457 = vrcp.pop %v1456
    %v1458 = vmul.f32 1.0, %v1457
    %v1459 = vadd.f32 %v1442, %v441
    %v1460 = vmul.f32 %v1451, %v1459
    %v1461 = vadd.f32 %v1303, %v1460
    %v1462 = vtanh.pop %v1461
    %v1463 = vsub.f32 1.0, %v1458
    %v1464 = vmul.f32 %v1463, %v1462
    %v1465 = vmul.f32 %v1458, %v1295
    %v1466 = vadd.f32 %v1464, %v1465
    %s1467 = scalar_lea.vmem [#allocation4], 40
    %1468 = vst [vmem:[%s1467] sm:$0xff] %v1466
    %s1469 = smul.u32 6, 3
    %s1470 = smul.addr %s1469, 8
    %s1471 = scalar_lea.vmem [#allocation3], %s1470
    %v1472 = vld [vmem:[%s1471] sm:$0xff]
    %v1473 = vld [vmem:[%s1471 + $0x8] sm:$0xff]
    %v1474 = vld [vmem:[%s1471 + $0x10] sm:$0xff]
    %1475 = vmatprep.subr.mxu0 %v389
    %1476 = vmatpush1.msra.mxu0 %v388
    %1477 = vmatprep.subr.mxu0 %v392
    %1478 = vmatpush1.msra.mxu0 %v391
    %1479 = vmatprep.subr.mxu0 %v395
    %1480 = vmatpush1.msra.mxu0 %v394
    %1481 = vmatprep.subr.mxu0 %v398
    %1482 = vmatpush1.msra.mxu0 %v397
    %1483 = vmatprep.subr.mxu0 %v401
    %1484 = vmatpush1.msra.mxu0 %v400
    %1485 = vmatprep.subr.mxu0 %v404
    %1486 = vmatpush1.msra.mxu0 %v403
    %1487 = vmatprep.subr.mxu0 %v407
    %1488 = vmatpush1.msra.mxu0 %v406
    %1489 = vmatprep.subr.mxu0 %v410
    %1490 = vmatpush1.msra.mxu0 %v409
    %1491 = vmatprep.subr.mxu0 %v413
    %1492 = vmatpush1.msra.mxu0 %v412
    %1493 = vmatprep.subr.mxu0 %v416
    %1494 = vmatpush1.msra.mxu0 %v415
    %1495 = vmatprep.subr.mxu0 %v419
    %1496 = vmatpush1.msra.mxu0 %v418
    %1497 = vmatprep.subr.mxu0 %v422
    %1498 = vmatpush1.msra.mxu0 %v421
    %1499 = vmatprep.subr.mxu0 %v425
    %1500 = vmatpush1.msra.mxu0 %v424
    %1501 = vmatprep.subr.mxu0 %v428
    %1502 = vmatpush1.msra.mxu0 %v427
    %1503 = vmatprep.subr.mxu0 %v431
    %1504 = vmatpush1.msra.mxu0 %v430
    %1505 = vmatprep.subr.mxu0 %v434
    %1506 = vmatpush1.msra.mxu0 %v433
    %1507 = vmatprep.subr.mxu0 0.0
    %1508 = vmatpush1.msra.mxu0 0.0
    %1509 = vmatprep.subr.mxu0 0.0
    %1510 = vmatpush1.msra.mxu0 0.0
    %1511 = vmatprep.subr.mxu0 0.0
    %1512 = vmatpush1.msra.mxu0 0.0
    %1513 = vmatprep.subr.mxu0 0.0
    %1514 = vmatpush1.msra.mxu0 0.0
    %1515 = vmatprep.subr.mxu0 0.0
    %1516 = vmatpush1.msra.mxu0 0.0
    %1517 = vmatprep.subr.mxu0 0.0
    %1518 = vmatpush1.msra.mxu0 0.0
    %1519 = vmatprep.subr.mxu0 0.0
    %1520 = vmatpush1.msra.mxu0 0.0
    %1521 = vmatprep.subr.mxu0 0.0
    %1522 = vmatpush1.msra.mxu0 0.0
    %1523 = vmatprep.subr.mxu0 0.0
    %1524 = vmatpush1.msra.mxu0 0.0
    %1525 = vmatprep.subr.mxu0 0.0
    %1526 = vmatpush1.msra.mxu0 0.0
    %1527 = vmatprep.subr.mxu0 0.0
    %1528 = vmatpush1.msra.mxu0 0.0
    %1529 = vmatprep.subr.mxu0 0.0
    %1530 = vmatpush1.msra.mxu0 0.0
    %1531 = vmatprep.subr.mxu0 0.0
    %1532 = vmatpush1.msra.mxu0 0.0
    %1533 = vmatprep.subr.mxu0 0.0
    %1534 = vmatpush1.msra.mxu0 0.0
    %1535 = vmatprep.subr.mxu0 0.0
    %1536 = vmatpush1.msra.mxu0 0.0
    %1537 = vmatprep.subr.mxu0 0.0
    %1538 = vmatpush1.msra.mxu0 0.0
    %1539 = vmatprep.mubr.f32.mxu0 0.0
    %1540 = vmatmul.mubr.f32.gmra.mrb[0].mxu0 %v1466
    %v1541 = vpop.f32.mrb[0].mxu0
    %v1542 = vadd.f32 0.0, %v1541
    %v1543 = vpop.f32.mrb[0].mxu0
    %v1544 = vadd.f32 0.0, %v1543
    %1545 = vdwg.mxu0
    %1546 = vmatprep.subr.mxu0 0.0
    %1547 = vmatpush1.msra.mxu0 %v390
    %1548 = vmatprep.subr.mxu0 0.0
    %1549 = vmatpush1.msra.mxu0 %v393
    %1550 = vmatprep.subr.mxu0 0.0
    %1551 = vmatpush1.msra.mxu0 %v396
    %1552 = vmatprep.subr.mxu0 0.0
    %1553 = vmatpush1.msra.mxu0 %v399
    %1554 = vmatprep.subr.mxu0 0.0
    %1555 = vmatpush1.msra.mxu0 %v402
    %1556 = vmatprep.subr.mxu0 0.0
    %1557 = vmatpush1.msra.mxu0 %v405
    %1558 = vmatprep.subr.mxu0 0.0
    %1559 = vmatpush1.msra.mxu0 %v408
    %1560 = vmatprep.subr.mxu0 0.0
    %1561 = vmatpush1.msra.mxu0 %v411
    %1562 = vmatprep.subr.mxu0 0.0
    %1563 = vmatpush1.msra.mxu0 %v414
    %1564 = vmatprep.subr.mxu0 0.0
    %1565 = vmatpush1.msra.mxu0 %v417
    %1566 = vmatprep.subr.mxu0 0.0
    %1567 = vmatpush1.msra.mxu0 %v420
    %1568 = vmatprep.subr.mxu0 0.0
    %1569 = vmatpush1.msra.mxu0 %v423
    %1570 = vmatprep.subr.mxu0 0.0
    %1571 = vmatpush1.msra.mxu0 %v426
    %1572 = vmatprep.subr.mxu0 0.0
    %1573 = vmatpush1.msra.mxu0 %v429
    %1574 = vmatprep.subr.mxu0 0.0
    %1575 = vmatpush1.msra.mxu0 %v432
    %1576 = vmatprep.subr.mxu0 0.0
    %1577 = vmatpush1.msra.mxu0 %v435
    %1578 = vmatprep.subr.mxu0 0.0
    %1579 = vmatpush1.msra.mxu0 0.0
    %1580 = vmatprep.subr.mxu0 0.0
    %1581 = vmatpush1.msra.mxu0 0.0
    %1582 = vmatprep.subr.mxu0 0.0
    %1583 = vmatpush1.msra.mxu0 0.0
    %1584 = vmatprep.subr.mxu0 0.0
    %1585 = vmatpush1.msra.mxu0 0.0
    %1586 = vmatprep.subr.mxu0 0.0
    %1587 = vmatpush1.msra.mxu0 0.0
    %1588 = vmatprep.subr.mxu0 0.0
    %1589 = vmatpush1.msra.mxu0 0.0
    %1590 = vmatprep.subr.mxu0 0.0
    %1591 = vmatpush1.msra.mxu0 0.0
    %1592 = vmatprep.subr.mxu0 0.0
    %1593 = vmatpush1.msra.mxu0 0.0
    %1594 = vmatprep.subr.mxu0 0.0
    %1595 = vmatpush1.msra.mxu0 0.0
    %1596 = vmatprep.subr.mxu0 0.0
    %1597 = vmatpush1.msra.mxu0 0.0
    %1598 = vmatprep.subr.mxu0 0.0
    %1599 = vmatpush1.msra.mxu0 0.0
    %1600 = vmatprep.subr.mxu0 0.0
    %1601 = vmatpush1.msra.mxu0 0.0
    %1602 = vmatprep.subr.mxu0 0.0
    %1603 = vmatpush1.msra.mxu0 0.0
    %1604 = vmatprep.subr.mxu0 0.0
    %1605 = vmatpush1.msra.mxu0 0.0
    %1606 = vmatprep.subr.mxu0 0.0
    %1607 = vmatpush1.msra.mxu0 0.0
    %1608 = vmatprep.subr.mxu0 0.0
    %1609 = vmatpush1.msra.mxu0 0.0
    %1610 = vmatprep.mubr.f32.mxu0 0.0
    %1611 = vmatmul.mubr.f32.gmra.mrb[0].mxu0 %v1466
    %v1612 = vpop.f32.mrb[0].mxu0
    %v1613 = vadd.f32 0.0, %v1612
    %v1614 = vpop.f32.mrb[0].mxu0
    %1615 = vdwg.mxu0
    %v1616 = vadd.f32 %v1472, %v1542
    %v1617 = vxor.u32 %v1616, 2147483648
    %v1618 = vmul.f32 %v1617, 1.442695
    %v1619 = vpow.pop %v1618
    %v1620 = vadd.f32 %v1619, 1.0
    %v1621 = vrcp.pop %v1620
    %v1622 = vmul.f32 1.0, %v1621
    %v1623 = vadd.f32 %v1473, %v1544
    %v1624 = vxor.u32 %v1623, 2147483648
    %v1625 = vmul.f32 %v1624, 1.442695
    %v1626 = vpow.pop %v1625
    %v1627 = vadd.f32 %v1626, 1.0
    %v1628 = vrcp.pop %v1627
    %v1629 = vmul.f32 1.0, %v1628
    %v1630 = vadd.f32 %v1613, %v441
    %v1631 = vmul.f32 %v1622, %v1630
    %v1632 = vadd.f32 %v1474, %v1631
    %v1633 = vtanh.pop %v1632
    %v1634 = vsub.f32 1.0, %v1629
    %v1635 = vmul.f32 %v1634, %v1633
    %v1636 = vmul.f32 %v1629, %v1466
    %v1637 = vadd.f32 %v1635, %v1636
    %s1638 = scalar_lea.vmem [#allocation4], 48
    %1639 = vst [vmem:[%s1638] sm:$0xff] %v1637
    %s1640 = smul.u32 7, 3
    %s1641 = smul.addr %s1640, 8
    %s1642 = scalar_lea.vmem [#allocation3], %s1641
    %v1643 = vld [vmem:[%s1642] sm:$0xff]
    %v1644 = vld [vmem:[%s1642 + $0x8] sm:$0xff]
    %v1645 = vld [vmem:[%s1642 + $0x10] sm:$0xff]
    %1646 = vmatprep.subr.mxu0 %v389
    %1647 = vmatpush1.msra.mxu0 %v388
    %1648 = vmatprep.subr.mxu0 %v392
    %1649 = vmatpush1.msra.mxu0 %v391
    %1650 = vmatprep.subr.mxu0 %v395
    %1651 = vmatpush1.msra.mxu0 %v394
    %1652 = vmatprep.subr.mxu0 %v398
    %1653 = vmatpush1.msra.mxu0 %v397
    %1654 = vmatprep.subr.mxu0 %v401
    %1655 = vmatpush1.msra.mxu0 %v400
    %1656 = vmatprep.subr.mxu0 %v404
    %1657 = vmatpush1.msra.mxu0 %v403
    %1658 = vmatprep.subr.mxu0 %v407
    %1659 = vmatpush1.msra.mxu0 %v406
    %1660 = vmatprep.subr.mxu0 %v410
    %1661 = vmatpush1.msra.mxu0 %v409
    %1662 = vmatprep.subr.mxu0 %v413
    %1663 = vmatpush1.msra.mxu0 %v412
    %1664 = vmatprep.subr.mxu0 %v416
    %1665 = vmatpush1.msra.mxu0 %v415
    %1666 = vmatprep.subr.mxu0 %v419
    %1667 = vmatpush1.msra.mxu0 %v418
    %1668 = vmatprep.subr.mxu0 %v422
    %1669 = vmatpush1.msra.mxu0 %v421
    %1670 = vmatprep.subr.mxu0 %v425
    %1671 = vmatpush1.msra.mxu0 %v424
    %1672 = vmatprep.subr.mxu0 %v428
    %1673 = vmatpush1.msra.mxu0 %v427
    %1674 = vmatprep.subr.mxu0 %v431
    %1675 = vmatpush1.msra.mxu0 %v430
    %1676 = vmatprep.subr.mxu0 %v434
    %1677 = vmatpush1.msra.mxu0 %v433
    %1678 = vmatprep.subr.mxu0 0.0
    %1679 = vmatpush1.msra.mxu0 0.0
    %1680 = vmatprep.subr.mxu0 0.0
    %1681 = vmatpush1.msra.mxu0 0.0
    %1682 = vmatprep.subr.mxu0 0.0
    %1683 = vmatpush1.msra.mxu0 0.0
    %1684 = vmatprep.subr.mxu0 0.0
    %1685 = vmatpush1.msra.mxu0 0.0
    %1686 = vmatprep.subr.mxu0 0.0
    %1687 = vmatpush1.msra.mxu0 0.0
    %1688 = vmatprep.subr.mxu0 0.0
    %1689 = vmatpush1.msra.mxu0 0.0
    %1690 = vmatprep.subr.mxu0 0.0
    %1691 = vmatpush1.msra.mxu0 0.0
    %1692 = vmatprep.subr.mxu0 0.0
    %1693 = vmatpush1.msra.mxu0 0.0
    %1694 = vmatprep.subr.mxu0 0.0
    %1695 = vmatpush1.msra.mxu0 0.0
    %1696 = vmatprep.subr.mxu0 0.0
    %1697 = vmatpush1.msra.mxu0 0.0
    %1698 = vmatprep.subr.mxu0 0.0
    %1699 = vmatpush1.msra.mxu0 0.0
    %1700 = vmatprep.subr.mxu0 0.0
    %1701 = vmatpush1.msra.mxu0 0.0
    %1702 = vmatprep.subr.mxu0 0.0
    %1703 = vmatpush1.msra.mxu0 0.0
    %1704 = vmatprep.subr.mxu0 0.0
    %1705 = vmatpush1.msra.mxu0 0.0
    %1706 = vmatprep.subr.mxu0 0.0
    %1707 = vmatpush1.msra.mxu0 0.0
    %1708 = vmatprep.subr.mxu0 0.0
    %1709 = vmatpush1.msra.mxu0 0.0
    %1710 = vmatprep.mubr.f32.mxu0 0.0
    %1711 = vmatmul.mubr.f32.gmra.mrb[0].mxu0 %v1637
    %v1712 = vpop.f32.mrb[0].mxu0
    %v1713 = vadd.f32 0.0, %v1712
    %v1714 = vpop.f32.mrb[0].mxu0
    %v1715 = vadd.f32 0.0, %v1714
    %1716 = vdwg.mxu0
    %1717 = vmatprep.subr.mxu0 0.0
    %1718 = vmatpush1.msra.mxu0 %v390
    %1719 = vmatprep.subr.mxu0 0.0
    %1720 = vmatpush1.msra.mxu0 %v393
    %1721 = vmatprep.subr.mxu0 0.0
    %1722 = vmatpush1.msra.mxu0 %v396
    %1723 = vmatprep.subr.mxu0 0.0
    %1724 = vmatpush1.msra.mxu0 %v399
    %1725 = vmatprep.subr.mxu0 0.0
    %1726 = vmatpush1.msra.mxu0 %v402
    %1727 = vmatprep.subr.mxu0 0.0
    %1728 = vmatpush1.msra.mxu0 %v405
    %1729 = vmatprep.subr.mxu0 0.0
    %1730 = vmatpush1.msra.mxu0 %v408
    %1731 = vmatprep.subr.mxu0 0.0
    %1732 = vmatpush1.msra.mxu0 %v411
    %1733 = vmatprep.subr.mxu0 0.0
    %1734 = vmatpush1.msra.mxu0 %v414
    %1735 = vmatprep.subr.mxu0 0.0
    %1736 = vmatpush1.msra.mxu0 %v417
    %1737 = vmatprep.subr.mxu0 0.0
    %1738 = vmatpush1.msra.mxu0 %v420
    %1739 = vmatprep.subr.mxu0 0.0
    %1740 = vmatpush1.msra.mxu0 %v423
    %1741 = vmatprep.subr.mxu0 0.0
    %1742 = vmatpush1.msra.mxu0 %v426
    %1743 = vmatprep.subr.mxu0 0.0
    %1744 = vmatpush1.msra.mxu0 %v429
    %1745 = vmatprep.subr.mxu0 0.0
    %1746 = vmatpush1.msra.mxu0 %v432
    %1747 = vmatprep.subr.mxu0 0.0
    %1748 = vmatpush1.msra.mxu0 %v435
    %1749 = vmatprep.subr.mxu0 0.0
    %1750 = vmatpush1.msra.mxu0 0.0
    %1751 = vmatprep.subr.mxu0 0.0
    %1752 = vmatpush1.msra.mxu0 0.0
    %1753 = vmatprep.subr.mxu0 0.0
    %1754 = vmatpush1.msra.mxu0 0.0
    %1755 = vmatprep.subr.mxu0 0.0
    %1756 = vmatpush1.msra.mxu0 0.0
    %1757 = vmatprep.subr.mxu0 0.0
    %1758 = vmatpush1.msra.mxu0 0.0
    %1759 = vmatprep.subr.mxu0 0.0
    %1760 = vmatpush1.msra.mxu0 0.0
    %1761 = vmatprep.subr.mxu0 0.0
    %1762 = vmatpush1.msra.mxu0 0.0
    %1763 = vmatprep.subr.mxu0 0.0
    %1764 = vmatpush1.msra.mxu0 0.0
    %1765 = vmatprep.subr.mxu0 0.0
    %1766 = vmatpush1.msra.mxu0 0.0
    %1767 = vmatprep.subr.mxu0 0.0
    %1768 = vmatpush1.msra.mxu0 0.0
    %1769 = vmatprep.subr.mxu0 0.0
    %1770 = vmatpush1.msra.mxu0 0.0
    %1771 = vmatprep.subr.mxu0 0.0
    %1772 = vmatpush1.msra.mxu0 0.0
    %1773 = vmatprep.subr.mxu0 0.0
    %1774 = vmatpush1.msra.mxu0 0.0
    %1775 = vmatprep.subr.mxu0 0.0
    %1776 = vmatpush1.msra.mxu0 0.0
    %1777 = vmatprep.subr.mxu0 0.0
    %1778 = vmatpush1.msra.mxu0 0.0
    %1779 = vmatprep.subr.mxu0 0.0
    %1780 = vmatpush1.msra.mxu0 0.0
    %1781 = vmatprep.mubr.f32.mxu0 0.0
    %1782 = vmatmul.mubr.f32.gmra.mrb[0].mxu0 %v1637
    %v1783 = vpop.f32.mrb[0].mxu0
    %v1784 = vadd.f32 0.0, %v1783
    %v1785 = vpop.f32.mrb[0].mxu0
    %1786 = vdwg.mxu0
    %v1787 = vadd.f32 %v1643, %v1713
    %v1788 = vxor.u32 %v1787, 2147483648
    %v1789 = vmul.f32 %v1788, 1.442695
    %v1790 = vpow.pop %v1789
    %v1791 = vadd.f32 %v1790, 1.0
    %v1792 = vrcp.pop %v1791
    %v1793 = vmul.f32 1.0, %v1792
    %v1794 = vadd.f32 %v1644, %v1715
    %v1795 = vxor.u32 %v1794, 2147483648
    %v1796 = vmul.f32 %v1795, 1.442695
    %v1797 = vpow.pop %v1796
    %v1798 = vadd.f32 %v1797, 1.0
    %v1799 = vrcp.pop %v1798
    %v1800 = vmul.f32 1.0, %v1799
    %v1801 = vadd.f32 %v1784, %v441
    %v1802 = vmul.f32 %v1793, %v1801
    %v1803 = vadd.f32 %v1645, %v1802
    %v1804 = vtanh.pop %v1803
    %v1805 = vsub.f32 1.0, %v1800
    %v1806 = vmul.f32 %v1805, %v1804
    %v1807 = vmul.f32 %v1800, %v1637
    %v1808 = vadd.f32 %v1806, %v1807
    %s1809 = scalar_lea.vmem [#allocation4], 56
    %1810 = vst [vmem:[%s1809] sm:$0xff] %v1808
    %1811 = vst [vmem:[#allocation2] sm:$0xff] %v1808
    %v1812 = vld [vmem:[#allocation4] sm:$0xff]
    %v1813 = vld [vmem:[#allocation4 + $0x8] sm:$0xff]
    %v1814 = vld [vmem:[#allocation4 + $0x10] sm:$0xff]
    %v1815 = vld [vmem:[#allocation4 + $0x18] sm:$0xff]
    %v1816 = vld [vmem:[#allocation4 + $0x20] sm:$0xff]
    %v1817 = vld [vmem:[#allocation4 + $0x28] sm:$0xff]
    %v1818 = vld [vmem:[#allocation4 + $0x30] sm:$0xff]
    %v1819 = vld [vmem:[#allocation4 + $0x38] sm:$0xff]
    %v1820 = vld [vmem:[#allocation8] sm:$0xff]
    %v1821 = vld [vmem:[#allocation8 + $0x8] sm:$0xff]
    %v1822 = vld [vmem:[#allocation8 + $0x10] sm:$0xff]
    %v1823 = vld [vmem:[#allocation8 + $0x18] sm:$0xff]
    %v1824 = vld [vmem:[#allocation8 + $0x20] sm:$0xff]
    %v1825 = vld [vmem:[#allocation8 + $0x28] sm:$0xff]
    %v1826 = vld [vmem:[#allocation8 + $0x30] sm:$0xff]
    %v1827 = vld [vmem:[#allocation8 + $0x38] sm:$0xff]
    %v1828 = vld [vmem:[#allocation8 + $0x40] sm:$0xff]
    %v1829 = vld [vmem:[#allocation8 + $0x48] sm:$0xff]
    %v1830 = vld [vmem:[#allocation8 + $0x50] sm:$0xff]
    %v1831 = vld [vmem:[#allocation8 + $0x58] sm:$0xff]
    %v1832 = vld [vmem:[#allocation8 + $0x60] sm:$0xff]
    %v1833 = vld [vmem:[#allocation8 + $0x68] sm:$0xff]
    %v1834 = vld [vmem:[#allocation8 + $0x70] sm:$0xff]
    %v1835 = vld [vmem:[#allocation8 + $0x78] sm:$0xff]
    %v1836 = vld [vmem:[%s6] sm:$0x1]
    %v1838 = vlaneseq
    %v1839 = vshrl.u32 %v1838, 7
    %v1840 = vsub.s32 0, %v1839
    %v1841 = vrot.slane %v1836, %v1840
    %1843 = vmatprep.subr.mxu0 0.0
    %1844 = vmatpush1.msra.mxu0 %v1820
    %1845 = vmatprep.subr.mxu0 0.0
    %1846 = vmatpush1.msra.mxu0 %v1821
    %1847 = vmatprep.subr.mxu0 0.0
    %1848 = vmatpush1.msra.mxu0 %v1822
    %1849 = vmatprep.subr.mxu0 0.0
    %1850 = vmatpush1.msra.mxu0 %v1823
    %1851 = vmatprep.subr.mxu0 0.0
    %1852 = vmatpush1.msra.mxu0 %v1824
    %1853 = vmatprep.subr.mxu0 0.0
    %1854 = vmatpush1.msra.mxu0 %v1825
    %1855 = vmatprep.subr.mxu0 0.0
    %1856 = vmatpush1.msra.mxu0 %v1826
    %1857 = vmatprep.subr.mxu0 0.0
    %1858 = vmatpush1.msra.mxu0 %v1827
    %1859 = vmatprep.subr.mxu0 0.0
    %1860 = vmatpush1.msra.mxu0 %v1828
    %1861 = vmatprep.subr.mxu0 0.0
    %1862 = vmatpush1.msra.mxu0 %v1829
    %1863 = vmatprep.subr.mxu0 0.0
    %1864 = vmatpush1.msra.mxu0 %v1830
    %1865 = vmatprep.subr.mxu0 0.0
    %1866 = vmatpush1.msra.mxu0 %v1831
    %1867 = vmatprep.subr.mxu0 0.0
    %1868 = vmatpush1.msra.mxu0 %v1832
    %1869 = vmatprep.subr.mxu0 0.0
    %1870 = vmatpush1.msra.mxu0 %v1833
    %1871 = vmatprep.subr.mxu0 0.0
    %1872 = vmatpush1.msra.mxu0 %v1834
    %1873 = vmatprep.subr.mxu0 0.0
    %1874 = vmatpush1.msra.mxu0 %v1835
    %1875 = vmatprep.subr.mxu0 0.0
    %1876 = vmatpush1.msra.mxu0 0.0
    %1877 = vmatprep.subr.mxu0 0.0
    %1878 = vmatpush1.msra.mxu0 0.0
    %1879 = vmatprep.subr.mxu0 0.0
    %1880 = vmatpush1.msra.mxu0 0.0
    %1881 = vmatprep.subr.mxu0 0.0
    %1882 = vmatpush1.msra.mxu0 0.0
    %1883 = vmatprep.subr.mxu0 0.0
    %1884 = vmatpush1.msra.mxu0 0.0
    %1885 = vmatprep.subr.mxu0 0.0
    %1886 = vmatpush1.msra.mxu0 0.0
    %1887 = vmatprep.subr.mxu0 0.0
    %1888 = vmatpush1.msra.mxu0 0.0
    %1889 = vmatprep.subr.mxu0 0.0
    %1890 = vmatpush1.msra.mxu0 0.0
    %1891 = vmatprep.subr.mxu0 0.0
    %1892 = vmatpush1.msra.mxu0 0.0
    %1893 = vmatprep.subr.mxu0 0.0
    %1894 = vmatpush1.msra.mxu0 0.0
    %1895 = vmatprep.subr.mxu0 0.0
    %1896 = vmatpush1.msra.mxu0 0.0
    %1897 = vmatprep.subr.mxu0 0.0
    %1898 = vmatpush1.msra.mxu0 0.0
    %1899 = vmatprep.subr.mxu0 0.0
    %1900 = vmatpush1.msra.mxu0 0.0
    %1901 = vmatprep.subr.mxu0 0.0
    %1902 = vmatpush1.msra.mxu0 0.0
    %1903 = vmatprep.subr.mxu0 0.0
    %1904 = vmatpush1.msra.mxu0 0.0
    %1905 = vmatprep.subr.mxu0 0.0
    %1906 = vmatpush1.msra.mxu0 0.0
    %1907 = vmatprep.mubr.f32.mxu0 0.0
    %1908 = vmatmul.mubr.f32.gmra.mrb[0].mxu0 %v1812
    %v1909 = vpop.f32.mrb[0].mxu0
    %v1910 = vadd.f32 %v1841, %v1909
    %v1911 = vpop.f32.mrb[0].mxu0
    %1912 = vmatprep.mubr.f32.mxu0 0.0
    %1913 = vmatmul.mubr.f32.gmra.mrb[0].mxu0 %v1813
    %v1914 = vpop.f32.mrb[0].mxu0
    %v1915 = vadd.f32 %v1841, %v1914
    %v1916 = vpop.f32.mrb[0].mxu0
    %1917 = vmatprep.mubr.f32.mxu0 0.0
    %1918 = vmatmul.mubr.f32.gmra.mrb[0].mxu0 %v1814
    %v1919 = vpop.f32.mrb[0].mxu0
    %v1920 = vadd.f32 %v1841, %v1919
    %v1921 = vpop.f32.mrb[0].mxu0
    %1922 = vmatprep.mubr.f32.mxu0 0.0
    %1923 = vmatmul.mubr.f32.gmra.mrb[0].mxu0 %v1815
    %v1924 = vpop.f32.mrb[0].mxu0
    %v1925 = vadd.f32 %v1841, %v1924
    %v1926 = vpop.f32.mrb[0].mxu0
    %1927 = vmatprep.mubr.f32.mxu0 0.0
    %1928 = vmatmul.mubr.f32.gmra.mrb[0].mxu0 %v1816
    %v1929 = vpop.f32.mrb[0].mxu0
    %v1930 = vadd.f32 %v1841, %v1929
    %v1931 = vpop.f32.mrb[0].mxu0
    %1932 = vmatprep.mubr.f32.mxu0 0.0
    %1933 = vmatmul.mubr.f32.gmra.mrb[0].mxu0 %v1817
    %v1934 = vpop.f32.mrb[0].mxu0
    %v1935 = vadd.f32 %v1841, %v1934
    %v1936 = vpop.f32.mrb[0].mxu0
    %1937 = vmatprep.mubr.f32.mxu0 0.0
    %1938 = vmatmul.mubr.f32.gmra.mrb[0].mxu0 %v1818
    %v1939 = vpop.f32.mrb[0].mxu0
    %v1940 = vadd.f32 %v1841, %v1939
    %v1941 = vpop.f32.mrb[0].mxu0
    %1942 = vmatprep.mubr.f32.mxu0 0.0
    %1943 = vmatmul.mubr.f32.gmra.mrb[0].mxu0 %v1819
    %v1944 = vpop.f32.mrb[0].mxu0
    %v1945 = vadd.f32 %v1841, %v1944
    %v1946 = vpop.f32.mrb[0].mxu0
    %1947 = vdwg.mxu0
    %v1948 = vld [vmem:[%s74] sm:$0xff]
    %v1949 = vld [vmem:[%s74 + $0x8] sm:$0xff]
    %v1950 = vld [vmem:[%s74 + $0x10] sm:$0xff]
    %v1951 = vld [vmem:[%s74 + $0x18] sm:$0xff]
    %v1952 = vld [vmem:[%s74 + $0x20] sm:$0xff]
    %v1953 = vld [vmem:[%s74 + $0x28] sm:$0xff]
    %v1954 = vld [vmem:[%s74 + $0x30] sm:$0xff]
    %v1955 = vld [vmem:[%s74 + $0x38] sm:$0xff]
    %1957 = vset.pattern.permute.xlu0 0
    %1958 = vperm.xlu0 %1957, %v1948
    %v1959 = vpop.permute.xlu0 %1958
    %1962 = vset.pattern.permute.xlu0 0
    %1963 = vperm.xlu0 %1962, %v1949
    %v1964 = vpop.permute.xlu0 %1963
    %1967 = vset.pattern.permute.xlu0 0
    %1968 = vperm.xlu0 %1967, %v1950
    %v1969 = vpop.permute.xlu0 %1968
    %1972 = vset.pattern.permute.xlu0 0
    %1973 = vperm.xlu0 %1972, %v1951
    %v1974 = vpop.permute.xlu0 %1973
    %1977 = vset.pattern.permute.xlu0 0
    %1978 = vperm.xlu0 %1977, %v1952
    %v1979 = vpop.permute.xlu0 %1978
    %1982 = vset.pattern.permute.xlu0 0
    %1983 = vperm.xlu0 %1982, %v1953
    %v1984 = vpop.permute.xlu0 %1983
    %1987 = vset.pattern.permute.xlu0 0
    %1988 = vperm.xlu0 %1987, %v1954
    %v1989 = vpop.permute.xlu0 %1988
    %1992 = vset.pattern.permute.xlu0 0
    %1993 = vperm.xlu0 %1992, %v1955
    %v1994 = vpop.permute.xlu0 %1993
    %v1996 = vadd.f32 %v1910, %v1959
    %v1997 = vadd.f32 %v1915, %v1964
    %v1998 = vadd.f32 %v1920, %v1969
    %v1999 = vadd.f32 %v1925, %v1974
    %v2000 = vadd.f32 %v1930, %v1979
    %v2001 = vadd.f32 %v1935, %v1984
    %v2002 = vadd.f32 %v1940, %v1989
    %v2003 = vadd.f32 %v1945, %v1994
    %2004 = vst [vmem:[#allocation10] sm:$0xff] %v1996
    %2005 = vst [vmem:[#allocation10 + $0x8] sm:$0xff] %v1997
    %2006 = vst [vmem:[#allocation10 + $0x10] sm:$0xff] %v1998
    %2007 = vst [vmem:[#allocation10 + $0x18] sm:$0xff] %v1999
    %2008 = vst [vmem:[#allocation10 + $0x20] sm:$0xff] %v2000
    %2009 = vst [vmem:[#allocation10 + $0x28] sm:$0xff] %v2001
    %2010 = vst [vmem:[#allocation10 + $0x30] sm:$0xff] %v2002
    %2011 = vst [vmem:[#allocation10 + $0x38] sm:$0xff] %v2003
    // Predicated region
    $region42: #{tpu_custom_call.1} parent=1 // pred_check
      _
    $region43: #{tpu_custom_call.1} parent=1 // pred_check_branch
      %2013 = sbr.rel (0) target = $region45
    $region44: #{tpu_custom_call.1} parent=1 // pred_region
      %s2014 = sadd.s32 0, 0
      %s2015 = smul.u32 8, %s2014
      %s2017 = ssub.s32 1024, 1024
      %2018 = vsyncadd [#allocation7], %s2017
      %s2019 = smul.addr %s2015, 128
      %s2020 = scalar_lea.hbm %s7, %s2019
      %s2021 = sshll.u32 [#allocation10], 4
      %s2022 = int_to_ptr.vmem [resolvable:$true] %s2021
      %2027 = dma.vmem_to_hbm [thread:$0]  %s2022, 1024, %s2020, [#allocation7], 128, 128, 8
    $region45: #{tpu_custom_call.1} parent=1 // pred_fallthru
      _
    // Predicated region
    $region46: #{tpu_custom_call.1} parent=1 // pred_check
      _
    $region47: #{tpu_custom_call.1} parent=1 // pred_check_branch
      %2029 = sbr.rel (0) target = $region49
    $region48: #{tpu_custom_call.1} parent=1 // pred_region
      %2030 = dma.done [#allocation7], 1024
    $region49: #{tpu_custom_call.1} parent=1 // pred_fallthru
      _
    %2031 = vsyncpa [#allocation6], 1
    %2032 = vsyncpa [#allocation9], 1
    %2033 = vsyncpa [#allocation7], 1

</llo_original>
